<compile_context>
chip_gen: v7x
topology: tpu7x:2x2x1
jax: 0.10.0
libtpu: 0.0.40
codegen_flags: <defaults>
</compile_context>

<pallas_src>
import functools

import jax
import jax.numpy as jnp
from jax.experimental import pallas as pl
from jax.experimental.pallas import tpu as pltpu


def _round_up(x, m):
    return ((x + m - 1) // m) * m


def _select_tiles(n, d_pad, itemsize):
    """Generation-aware (bm, bn, vmem_limit_bytes).

    bm = anchor rows resident across the column stream (per streamed fcol byte
    we do bm MACs, so bm must exceed the chip's FLOP/byte balance point to
    leave the HBM roofline); bn = streamed contrast columns (MXU width).
    """
    kind = ""
    try:
        kind = jax.devices()[0].device_kind.lower()
    except Exception:
        pass
    if "v7" in kind:
        # 2x256^2 MXU, ~3.2 TB/s/TC, only 64 MiB VMEM -> balance ~310 rows.
        bm_target, bn, vmem_budget = 512, 256, 48 * 1024 * 1024
    elif "v6" in kind:
        # 2x256^2 MXU, ~1.4 TB/s, 128 MiB VMEM -> balance ~650 rows.
        bm_target, bn, vmem_budget = 1024, 256, 100 * 1024 * 1024
    elif "v5" in kind:
        # 4x128^2 MXU, ~0.82 TB/s -> balance ~240 rows; bn=128 is MXU-native.
        bm_target, bn, vmem_budget = 384, 128, 96 * 1024 * 1024
    else:
        bm_target, bn, vmem_budget = 512, 256, 64 * 1024 * 1024

    try:  # refine the budget from the actual chip when the query is available
        cap = int(pltpu.get_tpu_info().vmem_capacity_bytes)
        vmem_budget = min(vmem_budget, int(cap * 0.75))
    except Exception:
        pass

    n128 = _round_up(max(n, 1), 128)
    bm = min(bm_target, n128)
    # Keep >= 2 row tiles when N allows it (dual-TC chips shard the parallel
    # anchor axis across cores; a single row tile leaves one core idle).
    if n128 >= 256:
        bm = min(bm, _round_up(n128 // 2, 128))
    bm = max(bm, 128)
    bn = max(128, min(bn, n128))

    def vmem_use(bm_, bn_):
        feats = (2 * bm_ + 3 * bn_) * d_pad * itemsize   # double/triple-buffered tiles
        temps = 6 * bm_ * bn_ * 4                        # f32 tile temporaries
        small = 6 * bm_ * 512 + 2 * bn_ * 512            # (bm,1)/(1,bn) scratch/labels/out
        return feats + temps + small

    while bm > 128 and vmem_use(bm, bn) > vmem_budget:
        bm = max(128, _round_up(bm // 2, 128))
    while bn > 128 and vmem_use(bm, bn) > vmem_budget:
        bn = max(128, _round_up(bn // 2, 128))
    if bm < bn:
        bn = bm
    if bm % bn != 0:
        bn = 128  # 128 divides every bm (all bm are multiples of 128)
    return bm, bn, int(vmem_budget)


def _supcon_kernel(frow_ref, fcol_ref, lrow_ref, lcol_ref, out_ref,
                   m_scr, l_scr, msum_scr, mls_scr, *,
                   inv_temp, loss_scale, n_valid, n_padded, bm, bn):
    # frow_ref : (bm, D_pad) matmul dtype -- anchor rows   (resident over j)
    # fcol_ref : (bn, D_pad) matmul dtype -- contrast cols (streamed over j)
    # lrow_ref : (bm, 1) int32, lcol_ref : (1, bn) int32
    # out_ref  : (bm, 1) f32 per-anchor loss
    # scratch  : four (bm, 1) f32 per-row accumulators (running max, masked
    #            sum-exp, sum(mask), sum(mask * raw_logits))
    i = pl.program_id(0)
    j = pl.program_id(1)
    n_j = pl.num_programs(1)

    @pl.when(j == 0)
    def _init():
        m_scr[...] = jnp.full_like(m_scr, -jnp.inf)
        l_scr[...] = jnp.zeros_like(l_scr)
        msum_scr[...] = jnp.zeros_like(msum_scr)
        mls_scr[...] = jnp.zeros_like(mls_scr)

    # Raw logits tile on the MXU: (bm, D) x (bn, D)^T with f32 accumulation.
    s = jax.lax.dot_general(
        frow_ref[...], fcol_ref[...],
        dimension_numbers=(((1,), (1,)), ((), ())),
        preferred_element_type=jnp.float32,
    ) * inv_temp                                                   # (bm, bn) f32

    labels_eq = lrow_ref[...] == lcol_ref[...]                     # (bm, bn) bool

    # Tile classification (scalar work only):
    #  * a tile needs the self-contrast mask iff its row/col index ranges overlap
    #  * a tile needs the padding-column mask iff it extends past n_valid
    row_lo = i * bm
    col_lo = j * bn
    overlaps = jnp.logical_and(row_lo < col_lo + bn, col_lo < row_lo + bm)
    if n_valid < n_padded:
        needs_mask = jnp.logical_or(overlaps, (col_lo + bn) > n_valid)
    else:
        needs_mask = overlaps

    @pl.when(jnp.logical_not(needs_mask))
    def _interior_tile():
        # No padding columns, no self pairs: skip iotas / compares / where.
        tile_max = jnp.max(s, axis=1, keepdims=True)
        m_new = jnp.maximum(m_scr[...], tile_max)
        alpha = jnp.exp(m_scr[...] - m_new)
        p = jnp.exp(s - m_new)
        posf = labels_eq.astype(jnp.float32)
        l_scr[...] = l_scr[...] * alpha + jnp.sum(p, axis=1, keepdims=True)
        m_scr[...] = m_new
        msum_scr[...] += jnp.sum(posf, axis=1, keepdims=True)
        mls_scr[...] += jnp.sum(posf * s, axis=1, keepdims=True)

    @pl.when(needs_mask)
    def _edge_or_diag_tile():
        row_ids = row_lo + jax.lax.broadcasted_iota(jnp.int32, (bm, 1), 0)
        col_ids = col_lo + jax.lax.broadcasted_iota(jnp.int32, (1, bn), 1)
        valid_col = col_ids < n_valid                              # (1, bn)
        logits_mask = jnp.logical_and(valid_col, row_ids != col_ids)
        posf = jnp.logical_and(labels_eq, logits_mask).astype(jnp.float32)

        # Row max matches the reference: over all valid columns (self included).
        tile_max = jnp.max(jnp.where(valid_col, s, -jnp.inf), axis=1,
                           keepdims=True)
        m_new = jnp.maximum(m_scr[...], tile_max)
        alpha = jnp.exp(m_scr[...] - m_new)
        # Mask the exponent (not the result): masked entries are exactly
        # exp(-inf) = 0 with no transient inf/nan at small temperatures.
        p = jnp.exp(jnp.where(logits_mask, s, -jnp.inf) - m_new)
        l_scr[...] = l_scr[...] * alpha + jnp.sum(p, axis=1, keepdims=True)
        m_scr[...] = m_new
        msum_scr[...] += jnp.sum(posf, axis=1, keepdims=True)
        mls_scr[...] += jnp.sum(posf * s, axis=1, keepdims=True)

    # Epilogue: O(bm) per-row work, only on the last column tile.
    @pl.when(j == n_j - 1)
    def _finish():
        log_denom = m_scr[...] + jnp.log(l_scr[...])
        msum = msum_scr[...]
        safe = jnp.where(msum < 1e-6, 1.0, msum)
        # sum(mask*log_prob) = sum(mask*s) - sum(mask) * (m + log l)
        mean_log_prob_pos = (mls_scr[...] - msum * log_denom) * pl.reciprocal(
            safe, approx=False)
        out_ref[...] = (-loss_scale) * mean_log_prob_pos


def supcon_loss(features, labels=None, mask=None, *, temperature=0.07,
                base_temperature=0.07, contrast_mode="all",
                matmul_dtype=jnp.bfloat16, bm=None, bn=None):
    """JAX/Pallas equivalent of SupConLoss.forward (contrast_mode='all').

    features : [bsz, n_views, ...] float array (trailing dims flattened).
    labels   : optional [bsz] int array. None -> SimCLR (eye mask).
    matmul_dtype : dtype fed to the MXU (bf16 default, f32 accumulation; pass
        jnp.float32 for bit-closer parity with the f32 PyTorch reference).
    bm, bn   : optional tile overrides (rows resident / cols streamed); by
        default chosen per TPU generation.
    """
    if features.ndim < 3:
        raise ValueError("`features` needs to be [bsz, n_views, ...]")
    if contrast_mode != "all":
        # TODO(synk): contrast_mode='one' (anchor = view 0 only) not implemented.
        raise ValueError("only contrast_mode='all' is supported")
    if mask is not None:
        # TODO(synk): explicit (bsz,bsz) contrastive `mask` argument not implemented.
        raise NotImplementedError("explicit `mask` is not supported; use `labels`")

    bsz, n_views = features.shape[0], features.shape[1]
    feats = features.reshape(bsz, n_views, -1).astype(jnp.float32)
    d = feats.shape[-1]
    n = bsz * n_views

    # Batch-major stacking of views. PyTorch stacks view-major
    # (torch.cat(torch.unbind(f, 1), 0)); the scalar loss is invariant to the
    # row permutation (per-anchor values come out in a different order).
    contrast = feats.reshape(n, d)

    if labels is None:
        labels = jnp.arange(bsz, dtype=jnp.int32)   # eye(bsz) mask == self-labels
    else:
        labels = jnp.asarray(labels).reshape(-1).astype(jnp.int32)
        if labels.shape[0] != bsz:
            raise ValueError("Num of labels does not match num of features")
    row_labels = jnp.repeat(labels, n_views)        # matches batch-major rows

    d_pad = _round_up(d, 128)
    itemsize = jnp.dtype(matmul_dtype).itemsize
    bm_sel, bn_sel, vmem_limit = _select_tiles(n, d_pad, itemsize)
    if bm is not None:
        bm_sel = int(bm)
    if bn is not None:
        bn_sel = int(bn)

    # Pad N to a multiple of both bm and bn (bm is a multiple of bn), and D to
    # a multiple of 128 (MXU lanes). Zero-padded feature rows/cols contribute
    # dot products of 0 and are masked out of the denominator / positives via
    # the `n_valid` column test (padding-tile path only).
    n_pad = _round_up(n, bm_sel)
    contrast = jnp.pad(contrast, ((0, n_pad - n), (0, d_pad - d)))
    contrast = contrast.astype(matmul_dtype)
    lab = jnp.pad(row_labels, (0, n_pad - n), constant_values=-1)
    lab_rows = lab.reshape(n_pad, 1)
    lab_cols = lab.reshape(1, n_pad)

    grid = (n_pad // bm_sel, n_pad // bn_sel)
    kernel = functools.partial(
        _supcon_kernel,
        inv_temp=1.0 / float(temperature),
        loss_scale=float(temperature) / float(base_temperature),
        n_valid=n,
        n_padded=n_pad,
        bm=bm_sel,
        bn=bn_sel,
    )

    # Streamed contrast-column tiles: deeper buffering hides the large anchor
    # row-tile DMA at row-tile boundaries once bm >> bn.
    if grid[1] >= 3:
        fcol_spec = pl.BlockSpec((bn_sel, d_pad), lambda i, j: (j, 0),
                                 pipeline_mode=pl.Buffered(3))
    else:
        fcol_spec = pl.BlockSpec((bn_sel, d_pad), lambda i, j: (j, 0))

    per_anchor = pl.pallas_call(
        kernel,
        out_shape=jax.ShapeDtypeStruct((n_pad, 1), jnp.float32),
        grid_spec=pltpu.PrefetchScalarGridSpec(
            num_scalar_prefetch=0,
            grid=grid,
            in_specs=[
                pl.BlockSpec((bm_sel, d_pad), lambda i, j: (i, 0)),  # anchor rows (resident)
                fcol_spec,                                           # contrast cols (streamed)
                pl.BlockSpec((bm_sel, 1), lambda i, j: (i, 0)),      # row labels
                pl.BlockSpec((1, bn_sel), lambda i, j: (0, j)),      # col labels
            ],
            out_specs=pl.BlockSpec((bm_sel, 1), lambda i, j: (i, 0)),
            scratch_shapes=[pltpu.VMEM((bm_sel, 1), jnp.float32)] * 4,
        ),
        compiler_params=pltpu.CompilerParams(
            dimension_semantics=("parallel", "arbitrary"),
            vmem_limit_bytes=int(vmem_limit),
        ),
    )(contrast, contrast, lab_rows, lab_cols)

    # loss.view(anchor_count, batch_size).mean() == mean over the N real anchors.
    return jnp.mean(per_anchor[:n, 0])


def _supcon_loss_ref(features, labels=None, temperature=0.07, base_temperature=0.07):
    """Pure-JAX reference mirroring the PyTorch code line-by-line."""
    bsz, n_views = features.shape[0], features.shape[1]
    features = features.reshape(bsz, n_views, -1).astype(jnp.float32)
    contrast = jnp.transpose(features, (1, 0, 2)).reshape(bsz * n_views, -1)
    if labels is None:
        mask = jnp.eye(bsz, dtype=jnp.float32)
    else:
        labels = labels.reshape(-1, 1)
        mask = (labels == labels.T).astype(jnp.float32)
    anchor = contrast
    adc = jnp.dot(anchor, contrast.T,
                  precision=jax.lax.Precision.HIGHEST) / temperature
    logits = adc - jnp.max(adc, axis=1, keepdims=True)
    mask = jnp.tile(mask, (n_views, n_views))
    logits_mask = 1.0 - jnp.eye(bsz * n_views, dtype=jnp.float32)
    mask = mask * logits_mask
    exp_logits = jnp.exp(logits) * logits_mask
    log_prob = logits - jnp.log(exp_logits.sum(1, keepdims=True))
    mpp = mask.sum(1)
    mpp = jnp.where(mpp < 1e-6, 1.0, mpp)
    mlpp = (mask * log_prob).sum(1) / mpp
    loss = -(temperature / base_temperature) * mlpp
    return loss.reshape(n_views, bsz).mean()


if __name__ == "__main__":
    key = jax.random.PRNGKey(0)
    k1, k2, k3, k4, k5, k6 = jax.random.split(key, 6)

    # Case 1: tiny single-tile problem (N = 16 -> one tile).
    bsz1, v1, d1 = 8, 2, 32
    f1 = jax.random.normal(k1, (bsz1, v1, d1), dtype=jnp.float32)
    f1 = f1 / jnp.linalg.norm(f1, axis=-1, keepdims=True)
    y1 = jax.random.randint(k2, (bsz1,), 0, 4, dtype=jnp.int32)

    # Case 2: multi-tile problem (N = 144) exercising the streaming LSE across
    # column tiles and the padding/diagonal masked-tile path.
    bsz2, v2, d2 = 72, 2, 48
    f2 = jax.random.normal(k3, (bsz2, v2, d2), dtype=jnp.float32)
    f2 = f2 / jnp.linalg.norm(f2, axis=-1, keepdims=True)
    y2 = jax.random.randint(k4, (bsz2,), 0, 10, dtype=jnp.int32)

    for feats, labels in [(f1, y1), (f1, None), (f2, y2), (f2, None)]:
        # Default bf16-MXU path: compare against a reference whose features got
        # the same bf16 rounding (all downstream math is f32 in both).
        got_bf16 = supcon_loss(feats, labels)
        jax.block_until_ready(got_bf16)
        feats_bf = feats.astype(jnp.bfloat16).astype(jnp.float32)
        ref_bf16 = _supcon_loss_ref(feats_bf, labels)
        assert jnp.allclose(got_bf16, ref_bf16, rtol=2e-3, atol=2e-3), (
            got_bf16, ref_bf16)

        # Full-f32 MXU path: parity with the PyTorch-equivalent reference.
        got_f32 = supcon_loss(feats, labels, matmul_dtype=jnp.float32)
        jax.block_until_ready(got_f32)
        ref_f32 = _supcon_loss_ref(feats, labels)
        assert jnp.allclose(got_f32, ref_f32, rtol=2e-3, atol=2e-3), (
            got_f32, ref_f32)

    # Case 3: larger problem (N = 800) exercising the interior fast-path tiles,
    # decoupled bm/bn tiling and the Buffered(3) streamed operand. bf16 path
    # (bf16 x bf16 products are exact in the f32 accumulator, so the comparison
    # against the bf16-rounded reference stays tight).
    bsz3, v3, d3 = 400, 2, 64
    f3 = jax.random.normal(k5, (bsz3, v3, d3), dtype=jnp.float32)
    f3 = f3 / jnp.linalg.norm(f3, axis=-1, keepdims=True)
    y3 = jax.random.randint(k6, (bsz3,), 0, 20, dtype=jnp.int32)
    for labels in (y3, None):
        got = supcon_loss(f3, labels)
        jax.block_until_ready(got)
        ref = _supcon_loss_ref(f3.astype(jnp.bfloat16).astype(jnp.float32), labels)
        assert jnp.allclose(got, ref, rtol=2e-3, atol=2e-3), (got, ref)

    print("KERNEL_OK")
</pallas_src>

<mosaic_0001>
module attributes {stable_mosaic.version = 11 : i64} {
  func.func @_supcon_kernel(%arg0: i32, %arg1: i32, %arg2: memref<128x128xbf16, #tpu.memory_space<vmem>>, %arg3: memref<128x128xbf16, #tpu.memory_space<vmem>>, %arg4: memref<128x1xi32, #tpu.memory_space<vmem>>, %arg5: memref<1x128xi32, #tpu.memory_space<vmem>>, %arg6: memref<128x1xf32, #tpu.memory_space<vmem>>, %arg7: memref<128x1xf32, #tpu.memory_space<vmem>>, %arg8: memref<128x1xf32, #tpu.memory_space<vmem>>, %arg9: memref<128x1xf32, #tpu.memory_space<vmem>>, %arg10: memref<128x1xf32, #tpu.memory_space<vmem>>) attributes {dimension_semantics = [#tpu.dimension_semantics<parallel>, #tpu.dimension_semantics<arbitrary>], iteration_bounds = array<i64: 1, 1>, scalar_prefetch = 0 : i64, scratch_operands = 4 : i64, tpu.core_type = #tpu.core_type<tc>, window_params = [{transform_indices = @transform_0, window_bounds = array<i64: 128, 128>}, {transform_indices = @transform_1, window_bounds = array<i64: 128, 128>}, {transform_indices = @transform_2, window_bounds = array<i64: 128, 1>}, {transform_indices = @transform_3, window_bounds = array<i64: 1, 128>}, {transform_indices = @transform_4, window_bounds = array<i64: 128, 1>}]} {
    %c0_i32 = arith.constant 0 : i32
    %0 = arith.cmpi eq, %arg1, %c0_i32 : i32
    %1 = arith.extui %0 : i1 to i32
    %c0_i32_0 = arith.constant 0 : i32
    %2 = arith.cmpi ne, %1, %c0_i32_0 : i32
    scf.if %2 {
      %cst_17 = arith.constant 0xFF800000 : f32
      %31 = vector.broadcast %cst_17 : f32 to vector<128x1xf32>
      %c0_18 = arith.constant 0 : index
      %c0_19 = arith.constant 0 : index
      %32 = vector.load %arg7[%c0_18, %c0_19] : memref<128x1xf32, #tpu.memory_space<vmem>>, vector<128x1xf32>
      tpu.vector_store %arg7[%c0_18, %c0_19], %31 {strides = array<i32>} : memref<128x1xf32, #tpu.memory_space<vmem>>, vector<128x1xf32>,
      %cst_20 = arith.constant 0.000000e+00 : f32
      %33 = vector.broadcast %cst_20 : f32 to vector<128x1xf32>
      %c0_21 = arith.constant 0 : index
      %c0_22 = arith.constant 0 : index
      %34 = vector.load %arg8[%c0_21, %c0_22] : memref<128x1xf32, #tpu.memory_space<vmem>>, vector<128x1xf32>
      tpu.vector_store %arg8[%c0_21, %c0_22], %33 {strides = array<i32>} : memref<128x1xf32, #tpu.memory_space<vmem>>, vector<128x1xf32>,
      %cst_23 = arith.constant 0.000000e+00 : f32
      %35 = vector.broadcast %cst_23 : f32 to vector<128x1xf32>
      %c0_24 = arith.constant 0 : index
      %c0_25 = arith.constant 0 : index
      %36 = vector.load %arg9[%c0_24, %c0_25] : memref<128x1xf32, #tpu.memory_space<vmem>>, vector<128x1xf32>
      tpu.vector_store %arg9[%c0_24, %c0_25], %35 {strides = array<i32>} : memref<128x1xf32, #tpu.memory_space<vmem>>, vector<128x1xf32>,
      %cst_26 = arith.constant 0.000000e+00 : f32
      %37 = vector.broadcast %cst_26 : f32 to vector<128x1xf32>
      %c0_27 = arith.constant 0 : index
      %c0_28 = arith.constant 0 : index
      %38 = vector.load %arg10[%c0_27, %c0_28] : memref<128x1xf32, #tpu.memory_space<vmem>>, vector<128x1xf32>
      tpu.vector_store %arg10[%c0_27, %c0_28], %37 {strides = array<i32>} : memref<128x1xf32, #tpu.memory_space<vmem>>, vector<128x1xf32>,
    } else {
    }
    %c0 = arith.constant 0 : index
    %c0_1 = arith.constant 0 : index
    %3 = vector.load %arg2[%c0, %c0_1] : memref<128x128xbf16, #tpu.memory_space<vmem>>, vector<128x128xbf16>
    %c0_2 = arith.constant 0 : index
    %c0_3 = arith.constant 0 : index
    %4 = vector.load %arg3[%c0_2, %c0_3] : memref<128x128xbf16, #tpu.memory_space<vmem>>, vector<128x128xbf16>
    %cst = arith.constant dense<0.000000e+00> : vector<128x128xf32>
    %5 = tpu.matmul %3, %4, %cst {dimension_numbers = #tpu.dot_dimension_numbers<[1], [1], [0], [0], [0, 0, 1, 0], [], []>} : vector<128x128xbf16>, vector<128x128xbf16>, vector<128x128xf32> -> vector<128x128xf32>
    %cst_4 = arith.constant 14.2857141 : f32
    %6 = vector.broadcast %cst_4 : f32 to vector<128x128xf32>
    %7 = arith.mulf %5, %6 : vector<128x128xf32>
    %c0_5 = arith.constant 0 : index
    %c0_6 = arith.constant 0 : index
    %8 = vector.load %arg4[%c0_5, %c0_6] : memref<128x1xi32, #tpu.memory_space<vmem>>, vector<128x1xi32>
    %c0_7 = arith.constant 0 : index
    %c0_8 = arith.constant 0 : index
    %9 = vector.load %arg5[%c0_7, %c0_8] : memref<1x128xi32, #tpu.memory_space<vmem>>, vector<1x128xi32>
    %10 = vector.broadcast %8 : vector<128x1xi32> to vector<128x128xi32>
    %11 = vector.broadcast %9 : vector<1x128xi32> to vector<128x128xi32>
    %12 = arith.cmpi eq, %10, %11 : vector<128x128xi32>
    %c128_i32 = arith.constant 128 : i32
    %13 = arith.muli %arg0, %c128_i32 : i32
    %c128_i32_9 = arith.constant 128 : i32
    %14 = arith.muli %arg1, %c128_i32_9 : i32
    %c128_i32_10 = arith.constant 128 : i32
    %15 = arith.addi %14, %c128_i32_10 : i32
    %16 = arith.cmpi slt, %13, %15 : i32
    %c128_i32_11 = arith.constant 128 : i32
    %17 = arith.addi %13, %c128_i32_11 : i32
    %18 = arith.cmpi slt, %14, %17 : i32
    %19 = arith.andi %16, %18 : i1
    %c128_i32_12 = arith.constant 128 : i32
    %20 = arith.addi %14, %c128_i32_12 : i32
    %c16_i32 = arith.constant 16 : i32
    %21 = arith.cmpi sgt, %20, %c16_i32 : i32
    %22 = arith.ori %19, %21 : i1
    %true = arith.constant true
    %23 = arith.xori %22, %true : i1
    %24 = arith.extui %23 : i1 to i32
    %c0_i32_13 = arith.constant 0 : i32
    %25 = arith.cmpi ne, %24, %c0_i32_13 : i32
    scf.if %25 {
      %cst_17 = arith.constant dense<0xFF800000> : vector<128xf32>
      %31 = vector.multi_reduction <maximumf>, %7, %cst_17 [1] : vector<128x128xf32> to vector<128xf32>
      %32 = vector.shape_cast %31 : vector<128xf32> to vector<128x1xf32>
      %c0_18 = arith.constant 0 : index
      %c0_19 = arith.constant 0 : index
      %33 = vector.load %arg7[%c0_18, %c0_19] : memref<128x1xf32, #tpu.memory_space<vmem>>, vector<128x1xf32>
      %34 = arith.maximumf %33, %32 : vector<128x1xf32>
      %c0_20 = arith.constant 0 : index
      %c0_21 = arith.constant 0 : index
      %35 = vector.load %arg7[%c0_20, %c0_21] : memref<128x1xf32, #tpu.memory_space<vmem>>, vector<128x1xf32>
      %36 = arith.subf %35, %34 : vector<128x1xf32>
      %37 = math.exp %36 : vector<128x1xf32>
      %38 = vector.broadcast %34 : vector<128x1xf32> to vector<128x128xf32>
      %39 = arith.subf %7, %38 : vector<128x128xf32>
      %40 = math.exp %39 : vector<128x128xf32>
      %41 = arith.extui %12 : vector<128x128xi1> to vector<128x128xi32>
      %42 = arith.sitofp %41 : vector<128x128xi32> to vector<128x128xf32>
      %c0_22 = arith.constant 0 : index
      %c0_23 = arith.constant 0 : index
      %43 = vector.load %arg8[%c0_22, %c0_23] : memref<128x1xf32, #tpu.memory_space<vmem>>, vector<128x1xf32>
      %44 = arith.mulf %43, %37 : vector<128x1xf32>
      %cst_24 = arith.constant dense<0.000000e+00> : vector<128xf32>
      %45 = vector.multi_reduction <add>, %40, %cst_24 [1] : vector<128x128xf32> to vector<128xf32>
      %46 = vector.shape_cast %45 : vector<128xf32> to vector<128x1xf32>
      %47 = arith.addf %44, %46 : vector<128x1xf32>
      %c0_25 = arith.constant 0 : index
      %c0_26 = arith.constant 0 : index
      %48 = vector.load %arg8[%c0_25, %c0_26] : memref<128x1xf32, #tpu.memory_space<vmem>>, vector<128x1xf32>
      tpu.vector_store %arg8[%c0_25, %c0_26], %47 {strides = array<i32>} : memref<128x1xf32, #tpu.memory_space<vmem>>, vector<128x1xf32>,
      %c0_27 = arith.constant 0 : index
      %c0_28 = arith.constant 0 : index
      %49 = vector.load %arg7[%c0_27, %c0_28] : memref<128x1xf32, #tpu.memory_space<vmem>>, vector<128x1xf32>
      tpu.vector_store %arg7[%c0_27, %c0_28], %34 {strides = array<i32>} : memref<128x1xf32, #tpu.memory_space<vmem>>, vector<128x1xf32>,
      %c0_29 = arith.constant 0 : index
      %c0_30 = arith.constant 0 : index
      %50 = vector.load %arg9[%c0_29, %c0_30] : memref<128x1xf32, #tpu.memory_space<vmem>>, vector<128x1xf32>
      %cst_31 = arith.constant dense<0.000000e+00> : vector<128xf32>
      %51 = vector.multi_reduction <add>, %42, %cst_31 [1] : vector<128x128xf32> to vector<128xf32>
      %52 = vector.shape_cast %51 : vector<128xf32> to vector<128x1xf32>
      %53 = arith.addf %50, %52 : vector<128x1xf32>
      %c0_32 = arith.constant 0 : index
      %c0_33 = arith.constant 0 : index
      %54 = vector.load %arg9[%c0_32, %c0_33] : memref<128x1xf32, #tpu.memory_space<vmem>>, vector<128x1xf32>
      tpu.vector_store %arg9[%c0_32, %c0_33], %53 {strides = array<i32>} : memref<128x1xf32, #tpu.memory_space<vmem>>, vector<128x1xf32>,
      %c0_34 = arith.constant 0 : index
      %c0_35 = arith.constant 0 : index
      %55 = vector.load %arg10[%c0_34, %c0_35] : memref<128x1xf32, #tpu.memory_space<vmem>>, vector<128x1xf32>
      %56 = arith.mulf %42, %7 : vector<128x128xf32>
      %cst_36 = arith.constant dense<0.000000e+00> : vector<128xf32>
      %57 = vector.multi_reduction <add>, %56, %cst_36 [1] : vector<128x128xf32> to vector<128xf32>
      %58 = vector.shape_cast %57 : vector<128xf32> to vector<128x1xf32>
      %59 = arith.addf %55, %58 : vector<128x1xf32>
      %c0_37 = arith.constant 0 : index
      %c0_38 = arith.constant 0 : index
      %60 = vector.load %arg10[%c0_37, %c0_38] : memref<128x1xf32, #tpu.memory_space<vmem>>, vector<128x1xf32>
      tpu.vector_store %arg10[%c0_37, %c0_38], %59 {strides = array<i32>} : memref<128x1xf32, #tpu.memory_space<vmem>>, vector<128x1xf32>,
    } else {
    }
    %26 = arith.extui %22 : i1 to i32
    %c0_i32_14 = arith.constant 0 : i32
    %27 = arith.cmpi ne, %26, %c0_i32_14 : i32
    scf.if %27 {
      %31 = tpu.iota {dimensions = array<i32: 0>} : vector<128x1xi32>
      %32 = vector.broadcast %13 : i32 to vector<128x1xi32>
      %33 = arith.addi %32, %31 : vector<128x1xi32>
      %34 = tpu.iota {dimensions = array<i32: 1>} : vector<1x128xi32>
      %35 = vector.broadcast %14 : i32 to vector<1x128xi32>
      %36 = arith.addi %35, %34 : vector<1x128xi32>
      %c16_i32_17 = arith.constant 16 : i32
      %37 = vector.broadcast %c16_i32_17 : i32 to vector<1x128xi32>
      %38 = arith.cmpi slt, %36, %37 : vector<1x128xi32>
      %39 = vector.broadcast %33 : vector<128x1xi32> to vector<128x128xi32>
      %40 = vector.broadcast %36 : vector<1x128xi32> to vector<128x128xi32>
      %41 = arith.cmpi ne, %39, %40 : vector<128x128xi32>
      %42 = vector.broadcast %38 : vector<1x128xi1> to vector<128x128xi1>
      %43 = arith.andi %42, %41 : vector<128x128xi1>
      %44 = arith.andi %12, %43 : vector<128x128xi1>
      %45 = arith.extui %44 : vector<128x128xi1> to vector<128x128xi32>
      %46 = arith.sitofp %45 : vector<128x128xi32> to vector<128x128xf32>
      %cst_18 = arith.constant 0xFF800000 : f32
      %47 = vector.shape_cast %38 : vector<1x128xi1> to vector<1x128xi1>
      %48 = vector.broadcast %47 : vector<1x128xi1> to vector<128x128xi1>
      %49 = vector.broadcast %cst_18 : f32 to vector<128x128xf32>
      %50 = arith.select %48, %7, %49 : vector<128x128xi1>, vector<128x128xf32>
      %cst_19 = arith.constant dense<0xFF800000> : vector<128xf32>
      %51 = vector.multi_reduction <maximumf>, %50, %cst_19 [1] : vector<128x128xf32> to vector<128xf32>
      %52 = vector.shape_cast %51 : vector<128xf32> to vector<128x1xf32>
      %c0_20 = arith.constant 0 : index
      %c0_21 = arith.constant 0 : index
      %53 = vector.load %arg7[%c0_20, %c0_21] : memref<128x1xf32, #tpu.memory_space<vmem>>, vector<128x1xf32>
      %54 = arith.maximumf %53, %52 : vector<128x1xf32>
      %c0_22 = arith.constant 0 : index
      %c0_23 = arith.constant 0 : index
      %55 = vector.load %arg7[%c0_22, %c0_23] : memref<128x1xf32, #tpu.memory_space<vmem>>, vector<128x1xf32>
      %56 = arith.subf %55, %54 : vector<128x1xf32>
      %57 = math.exp %56 : vector<128x1xf32>
      %cst_24 = arith.constant 0xFF800000 : f32
      %58 = vector.broadcast %cst_24 : f32 to vector<128x128xf32>
      %59 = arith.select %43, %7, %58 : vector<128x128xi1>, vector<128x128xf32>
      %60 = vector.broadcast %54 : vector<128x1xf32> to vector<128x128xf32>
      %61 = arith.subf %59, %60 : vector<128x128xf32>
      %62 = math.exp %61 : vector<128x128xf32>
      %c0_25 = arith.constant 0 : index
      %c0_26 = arith.constant 0 : index
      %63 = vector.load %arg8[%c0_25, %c0_26] : memref<128x1xf32, #tpu.memory_space<vmem>>, vector<128x1xf32>
      %64 = arith.mulf %63, %57 : vector<128x1xf32>
      %cst_27 = arith.constant dense<0.000000e+00> : vector<128xf32>
      %65 = vector.multi_reduction <add>, %62, %cst_27 [1] : vector<128x128xf32> to vector<128xf32>
      %66 = vector.shape_cast %65 : vector<128xf32> to vector<128x1xf32>
      %67 = arith.addf %64, %66 : vector<128x1xf32>
      %c0_28 = arith.constant 0 : index
      %c0_29 = arith.constant 0 : index
      %68 = vector.load %arg8[%c0_28, %c0_29] : memref<128x1xf32, #tpu.memory_space<vmem>>, vector<128x1xf32>
      tpu.vector_store %arg8[%c0_28, %c0_29], %67 {strides = array<i32>} : memref<128x1xf32, #tpu.memory_space<vmem>>, vector<128x1xf32>,
      %c0_30 = arith.constant 0 : index
      %c0_31 = arith.constant 0 : index
      %69 = vector.load %arg7[%c0_30, %c0_31] : memref<128x1xf32, #tpu.memory_space<vmem>>, vector<128x1xf32>
      tpu.vector_store %arg7[%c0_30, %c0_31], %54 {strides = array<i32>} : memref<128x1xf32, #tpu.memory_space<vmem>>, vector<128x1xf32>,
      %c0_32 = arith.constant 0 : index
      %c0_33 = arith.constant 0 : index
      %70 = vector.load %arg9[%c0_32, %c0_33] : memref<128x1xf32, #tpu.memory_space<vmem>>, vector<128x1xf32>
      %cst_34 = arith.constant dense<0.000000e+00> : vector<128xf32>
      %71 = vector.multi_reduction <add>, %46, %cst_34 [1] : vector<128x128xf32> to vector<128xf32>
      %72 = vector.shape_cast %71 : vector<128xf32> to vector<128x1xf32>
      %73 = arith.addf %70, %72 : vector<128x1xf32>
      %c0_35 = arith.constant 0 : index
      %c0_36 = arith.constant 0 : index
      %74 = vector.load %arg9[%c0_35, %c0_36] : memref<128x1xf32, #tpu.memory_space<vmem>>, vector<128x1xf32>
      tpu.vector_store %arg9[%c0_35, %c0_36], %73 {strides = array<i32>} : memref<128x1xf32, #tpu.memory_space<vmem>>, vector<128x1xf32>,
      %c0_37 = arith.constant 0 : index
      %c0_38 = arith.constant 0 : index
      %75 = vector.load %arg10[%c0_37, %c0_38] : memref<128x1xf32, #tpu.memory_space<vmem>>, vector<128x1xf32>
      %76 = arith.mulf %46, %7 : vector<128x128xf32>
      %cst_39 = arith.constant dense<0.000000e+00> : vector<128xf32>
      %77 = vector.multi_reduction <add>, %76, %cst_39 [1] : vector<128x128xf32> to vector<128xf32>
      %78 = vector.shape_cast %77 : vector<128xf32> to vector<128x1xf32>
      %79 = arith.addf %75, %78 : vector<128x1xf32>
      %c0_40 = arith.constant 0 : index
      %c0_41 = arith.constant 0 : index
      %80 = vector.load %arg10[%c0_40, %c0_41] : memref<128x1xf32, #tpu.memory_space<vmem>>, vector<128x1xf32>
      tpu.vector_store %arg10[%c0_40, %c0_41], %79 {strides = array<i32>} : memref<128x1xf32, #tpu.memory_space<vmem>>, vector<128x1xf32>,
    } else {
    }
    %c0_i32_15 = arith.constant 0 : i32
    %28 = arith.cmpi eq, %arg1, %c0_i32_15 : i32
    %29 = arith.extui %28 : i1 to i32
    %c0_i32_16 = arith.constant 0 : i32
    %30 = arith.cmpi ne, %29, %c0_i32_16 : i32
    scf.if %30 {
      %c0_17 = arith.constant 0 : index
      %c0_18 = arith.constant 0 : index
      %31 = vector.load %arg7[%c0_17, %c0_18] : memref<128x1xf32, #tpu.memory_space<vmem>>, vector<128x1xf32>
      %c0_19 = arith.constant 0 : index
      %c0_20 = arith.constant 0 : index
      %32 = vector.load %arg8[%c0_19, %c0_20] : memref<128x1xf32, #tpu.memory_space<vmem>>, vector<128x1xf32>
      %33 = math.log %32 : vector<128x1xf32>
      %34 = arith.addf %31, %33 : vector<128x1xf32>
      %c0_21 = arith.constant 0 : index
      %c0_22 = arith.constant 0 : index
      %35 = vector.load %arg9[%c0_21, %c0_22] : memref<128x1xf32, #tpu.memory_space<vmem>>, vector<128x1xf32>
      %cst_23 = arith.constant 9.99999997E-7 : f32
      %36 = vector.broadcast %cst_23 : f32 to vector<128x1xf32>
      %37 = arith.cmpf olt, %35, %36 : vector<128x1xf32>
      %cst_24 = arith.constant 1.000000e+00 : f32
      %38 = vector.broadcast %cst_24 : f32 to vector<128x1xf32>
      %39 = arith.select %37, %38, %35 : vector<128x1xi1>, vector<128x1xf32>
      %c0_25 = arith.constant 0 : index
      %c0_26 = arith.constant 0 : index
      %40 = vector.load %arg10[%c0_25, %c0_26] : memref<128x1xf32, #tpu.memory_space<vmem>>, vector<128x1xf32>
      %41 = arith.mulf %35, %34 : vector<128x1xf32>
      %42 = arith.subf %40, %41 : vector<128x1xf32>
      %43 = tpu.reciprocal %39 : vector<128x1xf32> -> vector<128x1xf32>
      %44 = arith.mulf %42, %43 : vector<128x1xf32>
      %cst_27 = arith.constant -1.000000e+00 : f32
      %45 = vector.broadcast %cst_27 : f32 to vector<128x1xf32>
      %46 = arith.mulf %45, %44 : vector<128x1xf32>
      %c0_28 = arith.constant 0 : index
      %c0_29 = arith.constant 0 : index
      %47 = vector.load %arg6[%c0_28, %c0_29] : memref<128x1xf32, #tpu.memory_space<vmem>>, vector<128x1xf32>
      tpu.vector_store %arg6[%c0_28, %c0_29], %46 {strides = array<i32>} : memref<128x1xf32, #tpu.memory_space<vmem>>, vector<128x1xf32>,
    } else {
    }
    return
  }
  func.func @transform_0(%arg0: i32, %arg1: i32) -> (i32, i32) {
    %c0_i32 = arith.constant 0 : i32
    %c0_i32_0 = arith.constant 0 : i32
    return %arg0, %c0_i32 : i32, i32
  }
  func.func @transform_1(%arg0: i32, %arg1: i32) -> (i32, i32) {
    %c0_i32 = arith.constant 0 : i32
    %c0_i32_0 = arith.constant 0 : i32
    return %arg1, %c0_i32 : i32, i32
  }
  func.func @transform_2(%arg0: i32, %arg1: i32) -> (i32, i32) {
    %c0_i32 = arith.constant 0 : i32
    %c0_i32_0 = arith.constant 0 : i32
    return %arg0, %c0_i32 : i32, i32
  }
  func.func @transform_3(%arg0: i32, %arg1: i32) -> (i32, i32) {
    %c0_i32 = arith.constant 0 : i32
    %c0_i32_0 = arith.constant 0 : i32
    return %c0_i32, %arg1 : i32, i32
  }
  func.func @transform_4(%arg0: i32, %arg1: i32) -> (i32, i32) {
    %c0_i32 = arith.constant 0 : i32
    %c0_i32_0 = arith.constant 0 : i32
    return %arg0, %c0_i32 : i32, i32
  }
}

</mosaic_0001>

<llo_original>
// kernel: tpu_custom_call.1
$region0: #{tpu_custom_call.1}
  #allocation0 [shape = 'u32[]', space=smem, size = 0x4, offset = 0x4, fixed_abs, tag = 'smem constant byte address 0x4 - core index']
  #allocation1 [shape = 'u32[144,128]{1,0:T(1,128)}', space=vmem, size = 0x12000, scoped, tag = 'internal scratch']
  #allocation2 [shape = 'f32[128,1]{1,0:T(8,128)}', space=vmem, size = 0x10000, scoped, tag = 'scratch operand']
  #allocation3 [shape = 'f32[128,1]{1,0:T(8,128)}', space=vmem, size = 0x10000, scoped, tag = 'scratch operand']
  #allocation4 [shape = 'f32[128,1]{1,0:T(8,128)}', space=vmem, size = 0x10000, scoped, tag = 'scratch operand']
  #allocation5 [shape = 'f32[128,1]{1,0:T(8,128)}', space=vmem, size = 0x10000, scoped, tag = 'scratch operand']
  %s0 = inlined_call_operand.hbm [shape: bf16[128,128], index: 0, kind: input, shape index: {}]
  %s1 = inlined_call_operand.hbm [shape: bf16[128,128], index: 1, kind: input, shape index: {}]
  %s2 = inlined_call_operand.hbm [shape: s32[128,1], index: 2, kind: input, shape index: {}]
  %s3 = inlined_call_operand.hbm [shape: s32[1,128], index: 3, kind: input, shape index: {}]
  %s4 = inlined_call_operand.hbm [shape: f32[128,1], index: 4, kind: output, shape index: {}]
  %s5 = sld [smem:[#allocation0]]
  $region58: #{tpu_custom_call.1} parent=0
    _
  %s7 = ssub.s32 1, %s5
  %s8 = scalar_select 0, %s7, %s5
  $region1: #{tpu_custom_call.1} parent=0
    #allocation6 [shape = 'u8[32768]{0}', space=vmem, size = 0x8000, scoped, tag = 'input window, operand 0, single buffered']
    #allocation7 [shape = 's32[1]{0}', space=sflag, size = 0x4, scoped, tag = 'scoped memory for tpu_custom_call.1']
    #allocation8 [shape = 's32[1]{0}', space=sflag, size = 0x4, scoped, tag = 'scoped memory for tpu_custom_call.1']
    #allocation9 [shape = 'u8[32768]{0}', space=vmem, size = 0x8000, scoped, tag = 'input window, operand 1, single buffered']
    #allocation10 [shape = 's32[1]{0}', space=sflag, size = 0x4, scoped, tag = 'scoped memory for tpu_custom_call.1']
    #allocation11 [shape = 'u8[65536]{0}', space=vmem, size = 0x10000, scoped, tag = 'input window, operand 2, single buffered']
    #allocation12 [shape = 'u8[512]{0}', space=vmem, size = 0x400, scoped, tag = 'input window, operand 3, single buffered']
    #allocation13 [shape = 's32[1]{0}', space=sflag, size = 0x4, scoped, tag = 'scoped memory for tpu_custom_call.1']
    #allocation14 [shape = 'u8[65536]{0}', space=vmem, size = 0x10000, scoped, tag = 'output window, operand 0, single buffered']
    %9 = vsyncpa [#allocation7], 0
    %10 = vsyncpa [#allocation10], 0
    %11 = vsyncpa [#allocation13], 0
    %12 = vsyncpa [#allocation8], 0
    // Predicated region
    $region2: #{tpu_custom_call.1} parent=1 // pred_check
      _
    $region3: #{tpu_custom_call.1} parent=1 // pred_check_branch
      %14 = sbr.rel (0) target = $region5
    $region4: #{tpu_custom_call.1} parent=1 // pred_region
      %s16 = ssub.s32 1024, 1024
      %17 = vsyncadd [#allocation7], %s16
      %s18 = sshll.u32 [#allocation6], 4
      %s19 = int_to_ptr.vmem [resolvable:$true] %s18
      %24 = dma.hbm_to_vmem [thread:$0]  %s0, 1024, %s19, [#allocation7], 64, 64, 4
    $region5: #{tpu_custom_call.1} parent=1 // pred_fallthru
      _
    // Predicated region
    $region6: #{tpu_custom_call.1} parent=1 // pred_check
      _
    $region7: #{tpu_custom_call.1} parent=1 // pred_check_branch
      %26 = sbr.rel (0) target = $region9
    $region8: #{tpu_custom_call.1} parent=1 // pred_region
      %s28 = ssub.s32 1024, 1024
      %29 = vsyncadd [#allocation10], %s28
      %s30 = sshll.u32 [#allocation9], 4
      %s31 = int_to_ptr.vmem [resolvable:$true] %s30
      %36 = dma.hbm_to_vmem [thread:$0]  %s1, 1024, %s31, [#allocation10], 64, 64, 4
    $region9: #{tpu_custom_call.1} parent=1 // pred_fallthru
      _
    // Predicated region
    $region10: #{tpu_custom_call.1} parent=1 // pred_check
      _
    $region11: #{tpu_custom_call.1} parent=1 // pred_check_branch
      %38 = sbr.rel (0) target = $region13
    $region12: #{tpu_custom_call.1} parent=1 // pred_region
      %s40 = ssub.s32 2048, 2048
      %41 = vsyncadd [#allocation10], %s40
      %s42 = sshll.u32 [#allocation11], 4
      %s43 = int_to_ptr.vmem [resolvable:$true] %s42
      %48 = dma.hbm_to_vmem [thread:$0]  %s2, 2048, %s43, [#allocation10], 128, 128, 8
    $region13: #{tpu_custom_call.1} parent=1 // pred_fallthru
      _
    // Predicated region
    $region14: #{tpu_custom_call.1} parent=1 // pred_check
      _
    $region15: #{tpu_custom_call.1} parent=1 // pred_check_branch
      %50 = sbr.rel (0) target = $region17
    $region16: #{tpu_custom_call.1} parent=1 // pred_region
      %s52 = ssub.s32 16, 16
      %53 = vsyncadd [#allocation13], %s52
      %s55 = sshll.u32 [#allocation12], 4
      %s56 = int_to_ptr.vmem [resolvable:$true] %s55
      %58 = dma.hbm_to_vmem [thread:$0]  %s3, 16, %s56, [#allocation13]
    $region17: #{tpu_custom_call.1} parent=1 // pred_fallthru
      _
    // Predicated region
    $region18: #{tpu_custom_call.1} parent=1 // pred_check
      _
    $region19: #{tpu_custom_call.1} parent=1 // pred_check_branch
      %60 = sbr.rel (0) target = $region21
    $region20: #{tpu_custom_call.1} parent=1 // pred_region
      %61 = dma.done [#allocation7], 1024
    $region21: #{tpu_custom_call.1} parent=1 // pred_fallthru
      _
    // Predicated region
    $region22: #{tpu_custom_call.1} parent=1 // pred_check
      _
    $region23: #{tpu_custom_call.1} parent=1 // pred_check_branch
      %63 = sbr.rel (0) target = $region25
    $region24: #{tpu_custom_call.1} parent=1 // pred_region
      %64 = dma.done [#allocation10], 1024
    $region25: #{tpu_custom_call.1} parent=1 // pred_fallthru
      _
    // Predicated region
    $region26: #{tpu_custom_call.1} parent=1 // pred_check
      _
    $region27: #{tpu_custom_call.1} parent=1 // pred_check_branch
      %66 = sbr.rel (0) target = $region29
    $region28: #{tpu_custom_call.1} parent=1 // pred_region
      %67 = dma.done [#allocation10], 2048
    $region29: #{tpu_custom_call.1} parent=1 // pred_fallthru
      _
    // Predicated region
    $region30: #{tpu_custom_call.1} parent=1 // pred_check
      _
    $region31: #{tpu_custom_call.1} parent=1 // pred_check_branch
      %69 = sbr.rel (0) target = $region33
    $region32: #{tpu_custom_call.1} parent=1 // pred_region
      %70 = dma.done [#allocation13], 16
    $region33: #{tpu_custom_call.1} parent=1 // pred_fallthru
      _
    %p72 = scmp.eq.s32.totalorder 0, 0
    // Predicated region
    $region34: #{tpu_custom_call.1} parent=1 // pred_check
      %p73 = pneg %p72
    $region35: #{tpu_custom_call.1} parent=1 // pred_check_branch
      %75 = sbr.rel (%p73) target = $region37
    $region36: #{tpu_custom_call.1} parent=1 // pred_region
      %vm76 = vcmask 7168
      %77 = vst.msk [vmem:[#allocation2] sm:$0xff] %vm76, -inf
      %78 = vst.msk [vmem:[#allocation2 + $0x8] sm:$0xff] %vm76, -inf
      %79 = vst.msk [vmem:[#allocation2 + $0x10] sm:$0xff] %vm76, -inf
      %80 = vst.msk [vmem:[#allocation2 + $0x18] sm:$0xff] %vm76, -inf
      %81 = vst.msk [vmem:[#allocation2 + $0x20] sm:$0xff] %vm76, -inf
      %82 = vst.msk [vmem:[#allocation2 + $0x28] sm:$0xff] %vm76, -inf
      %83 = vst.msk [vmem:[#allocation2 + $0x30] sm:$0xff] %vm76, -inf
      %84 = vst.msk [vmem:[#allocation2 + $0x38] sm:$0xff] %vm76, -inf
      %85 = vst.msk [vmem:[#allocation2 + $0x40] sm:$0xff] %vm76, -inf
      %86 = vst.msk [vmem:[#allocation2 + $0x48] sm:$0xff] %vm76, -inf
      %87 = vst.msk [vmem:[#allocation2 + $0x50] sm:$0xff] %vm76, -inf
      %88 = vst.msk [vmem:[#allocation2 + $0x58] sm:$0xff] %vm76, -inf
      %89 = vst.msk [vmem:[#allocation2 + $0x60] sm:$0xff] %vm76, -inf
      %90 = vst.msk [vmem:[#allocation2 + $0x68] sm:$0xff] %vm76, -inf
      %91 = vst.msk [vmem:[#allocation2 + $0x70] sm:$0xff] %vm76, -inf
      %92 = vst.msk [vmem:[#allocation2 + $0x78] sm:$0xff] %vm76, -inf
      %93 = vst.msk [vmem:[#allocation3] sm:$0xff] %vm76, 0.0
      %94 = vst.msk [vmem:[#allocation3 + $0x8] sm:$0xff] %vm76, 0.0
      %95 = vst.msk [vmem:[#allocation3 + $0x10] sm:$0xff] %vm76, 0.0
      %96 = vst.msk [vmem:[#allocation3 + $0x18] sm:$0xff] %vm76, 0.0
      %97 = vst.msk [vmem:[#allocation3 + $0x20] sm:$0xff] %vm76, 0.0
      %98 = vst.msk [vmem:[#allocation3 + $0x28] sm:$0xff] %vm76, 0.0
      %99 = vst.msk [vmem:[#allocation3 + $0x30] sm:$0xff] %vm76, 0.0
      %100 = vst.msk [vmem:[#allocation3 + $0x38] sm:$0xff] %vm76, 0.0
      %101 = vst.msk [vmem:[#allocation3 + $0x40] sm:$0xff] %vm76, 0.0
      %102 = vst.msk [vmem:[#allocation3 + $0x48] sm:$0xff] %vm76, 0.0
      %103 = vst.msk [vmem:[#allocation3 + $0x50] sm:$0xff] %vm76, 0.0
      %104 = vst.msk [vmem:[#allocation3 + $0x58] sm:$0xff] %vm76, 0.0
      %105 = vst.msk [vmem:[#allocation3 + $0x60] sm:$0xff] %vm76, 0.0
      %106 = vst.msk [vmem:[#allocation3 + $0x68] sm:$0xff] %vm76, 0.0
      %107 = vst.msk [vmem:[#allocation3 + $0x70] sm:$0xff] %vm76, 0.0
      %108 = vst.msk [vmem:[#allocation3 + $0x78] sm:$0xff] %vm76, 0.0
      %109 = vst.msk [vmem:[#allocation4] sm:$0xff] %vm76, 0.0
      %110 = vst.msk [vmem:[#allocation4 + $0x8] sm:$0xff] %vm76, 0.0
      %111 = vst.msk [vmem:[#allocation4 + $0x10] sm:$0xff] %vm76, 0.0
      %112 = vst.msk [vmem:[#allocation4 + $0x18] sm:$0xff] %vm76, 0.0
      %113 = vst.msk [vmem:[#allocation4 + $0x20] sm:$0xff] %vm76, 0.0
      %114 = vst.msk [vmem:[#allocation4 + $0x28] sm:$0xff] %vm76, 0.0
      %115 = vst.msk [vmem:[#allocation4 + $0x30] sm:$0xff] %vm76, 0.0
      %116 = vst.msk [vmem:[#allocation4 + $0x38] sm:$0xff] %vm76, 0.0
      %117 = vst.msk [vmem:[#allocation4 + $0x40] sm:$0xff] %vm76, 0.0
      %118 = vst.msk [vmem:[#allocation4 + $0x48] sm:$0xff] %vm76, 0.0
      %119 = vst.msk [vmem:[#allocation4 + $0x50] sm:$0xff] %vm76, 0.0
      %120 = vst.msk [vmem:[#allocation4 + $0x58] sm:$0xff] %vm76, 0.0
      %121 = vst.msk [vmem:[#allocation4 + $0x60] sm:$0xff] %vm76, 0.0
      %122 = vst.msk [vmem:[#allocation4 + $0x68] sm:$0xff] %vm76, 0.0
      %123 = vst.msk [vmem:[#allocation4 + $0x70] sm:$0xff] %vm76, 0.0
      %124 = vst.msk [vmem:[#allocation4 + $0x78] sm:$0xff] %vm76, 0.0
      %125 = vst.msk [vmem:[#allocation5] sm:$0xff] %vm76, 0.0
      %126 = vst.msk [vmem:[#allocation5 + $0x8] sm:$0xff] %vm76, 0.0
      %127 = vst.msk [vmem:[#allocation5 + $0x10] sm:$0xff] %vm76, 0.0
      %128 = vst.msk [vmem:[#allocation5 + $0x18] sm:$0xff] %vm76, 0.0
      %129 = vst.msk [vmem:[#allocation5 + $0x20] sm:$0xff] %vm76, 0.0
      %130 = vst.msk [vmem:[#allocation5 + $0x28] sm:$0xff] %vm76, 0.0
      %131 = vst.msk [vmem:[#allocation5 + $0x30] sm:$0xff] %vm76, 0.0
      %132 = vst.msk [vmem:[#allocation5 + $0x38] sm:$0xff] %vm76, 0.0
      %133 = vst.msk [vmem:[#allocation5 + $0x40] sm:$0xff] %vm76, 0.0
      %134 = vst.msk [vmem:[#allocation5 + $0x48] sm:$0xff] %vm76, 0.0
      %135 = vst.msk [vmem:[#allocation5 + $0x50] sm:$0xff] %vm76, 0.0
      %136 = vst.msk [vmem:[#allocation5 + $0x58] sm:$0xff] %vm76, 0.0
      %137 = vst.msk [vmem:[#allocation5 + $0x60] sm:$0xff] %vm76, 0.0
      %138 = vst.msk [vmem:[#allocation5 + $0x68] sm:$0xff] %vm76, 0.0
      %139 = vst.msk [vmem:[#allocation5 + $0x70] sm:$0xff] %vm76, 0.0
      %140 = vst.msk [vmem:[#allocation5 + $0x78] sm:$0xff] %vm76, 0.0
    $region37: #{tpu_custom_call.1} parent=1 // pred_fallthru
      _
    %v141 = vld [vmem:[#allocation6] sm:$0xf]
    %v142 = vld [vmem:[#allocation6 + $0x4] sm:$0xf]
    %v143 = vld [vmem:[#allocation6 + $0x8] sm:$0xf]
    %v144 = vld [vmem:[#allocation6 + $0xc] sm:$0xf]
    %v145 = vld [vmem:[#allocation6 + $0x10] sm:$0xf]
    %v146 = vld [vmem:[#allocation6 + $0x14] sm:$0xf]
    %v147 = vld [vmem:[#allocation6 + $0x18] sm:$0xf]
    %v148 = vld [vmem:[#allocation6 + $0x1c] sm:$0xf]
    %v149 = vld [vmem:[#allocation6 + $0x20] sm:$0xf]
    %v150 = vld [vmem:[#allocation6 + $0x24] sm:$0xf]
    %v151 = vld [vmem:[#allocation6 + $0x28] sm:$0xf]
    %v152 = vld [vmem:[#allocation6 + $0x2c] sm:$0xf]
    %v153 = vld [vmem:[#allocation6 + $0x30] sm:$0xf]
    %v154 = vld [vmem:[#allocation6 + $0x34] sm:$0xf]
    %v155 = vld [vmem:[#allocation6 + $0x38] sm:$0xf]
    %v156 = vld [vmem:[#allocation6 + $0x3c] sm:$0xf]
    %v157 = vld [vmem:[#allocation9] sm:$0xf]
    %v158 = vld [vmem:[#allocation9 + $0x4] sm:$0xf]
    %v159 = vld [vmem:[#allocation9 + $0x8] sm:$0xf]
    %v160 = vld [vmem:[#allocation9 + $0xc] sm:$0xf]
    %v161 = vld [vmem:[#allocation9 + $0x10] sm:$0xf]
    %v162 = vld [vmem:[#allocation9 + $0x14] sm:$0xf]
    %v163 = vld [vmem:[#allocation9 + $0x18] sm:$0xf]
    %v164 = vld [vmem:[#allocation9 + $0x1c] sm:$0xf]
    %v165 = vld [vmem:[#allocation9 + $0x20] sm:$0xf]
    %v166 = vld [vmem:[#allocation9 + $0x24] sm:$0xf]
    %v167 = vld [vmem:[#allocation9 + $0x28] sm:$0xf]
    %v168 = vld [vmem:[#allocation9 + $0x2c] sm:$0xf]
    %v169 = vld [vmem:[#allocation9 + $0x30] sm:$0xf]
    %v170 = vld [vmem:[#allocation9 + $0x34] sm:$0xf]
    %v171 = vld [vmem:[#allocation9 + $0x38] sm:$0xf]
    %v172 = vld [vmem:[#allocation9 + $0x3c] sm:$0xf]
    %v189 = vunpack.c.l.b16 %v141
    %v190 = vunpack.c.l.b16 %v142
    %v191 = vunpack.c.l.b16 %v143
    %v192 = vunpack.c.l.b16 %v144
    %v193 = vunpack.c.l.b16 %v145
    %v194 = vunpack.c.l.b16 %v146
    %v195 = vunpack.c.l.b16 %v147
    %v196 = vunpack.c.l.b16 %v148
    %v197 = vunpack.c.l.b16 %v149
    %v198 = vunpack.c.l.b16 %v150
    %v199 = vunpack.c.l.b16 %v151
    %v200 = vunpack.c.l.b16 %v152
    %v201 = vunpack.c.l.b16 %v153
    %v202 = vunpack.c.l.b16 %v154
    %v203 = vunpack.c.l.b16 %v155
    %v204 = vunpack.c.l.b16 %v156
    %v205 = vpack.c.b16 %v190, %v189
    %v206 = vpack.c.b16 %v192, %v191
    %v207 = vpack.c.b16 %v194, %v193
    %v208 = vpack.c.b16 %v196, %v195
    %v209 = vpack.c.b16 %v198, %v197
    %v210 = vpack.c.b16 %v200, %v199
    %v211 = vpack.c.b16 %v202, %v201
    %v212 = vpack.c.b16 %v204, %v203
    %v237 = vunpack.c.l.b16 %v157
    %v238 = vunpack.c.l.b16 %v158
    %v239 = vunpack.c.l.b16 %v159
    %v240 = vunpack.c.l.b16 %v160
    %v241 = vunpack.c.l.b16 %v161
    %v242 = vunpack.c.l.b16 %v162
    %v243 = vunpack.c.l.b16 %v163
    %v244 = vunpack.c.l.b16 %v164
    %v245 = vunpack.c.l.b16 %v165
    %v246 = vunpack.c.l.b16 %v166
    %v247 = vunpack.c.l.b16 %v167
    %v248 = vunpack.c.l.b16 %v168
    %v249 = vunpack.c.l.b16 %v169
    %v250 = vunpack.c.l.b16 %v170
    %v251 = vunpack.c.l.b16 %v171
    %v252 = vunpack.c.l.b16 %v172
    %v253 = vpack.c.b16 %v238, %v237
    %v254 = vpack.c.b16 %v240, %v239
    %v255 = vpack.c.b16 %v242, %v241
    %v256 = vpack.c.b16 %v244, %v243
    %v257 = vpack.c.b16 %v246, %v245
    %v258 = vpack.c.b16 %v248, %v247
    %v259 = vpack.c.b16 %v250, %v249
    %v260 = vpack.c.b16 %v252, %v251
    %269 = vmatprep.subr.bf16.mxu0 0
    %270 = vmatpush1.bf16.xpose.msra.mxu0 %v253
    %271 = vmatprep.subr.bf16.mxu0 0
    %272 = vmatpush1.bf16.xpose.msra.mxu0 %v254
    %273 = vmatprep.subr.bf16.mxu0 0
    %274 = vmatpush1.bf16.xpose.msra.mxu0 %v255
    %275 = vmatprep.subr.bf16.mxu0 0
    %276 = vmatpush1.bf16.xpose.msra.mxu0 %v256
    %277 = vmatprep.subr.bf16.mxu0 0
    %278 = vmatpush1.bf16.xpose.msra.mxu0 %v257
    %279 = vmatprep.subr.bf16.mxu0 0
    %280 = vmatpush1.bf16.xpose.msra.mxu0 %v258
    %281 = vmatprep.subr.bf16.mxu0 0
    %282 = vmatpush1.bf16.xpose.msra.mxu0 %v259
    %283 = vmatprep.subr.bf16.mxu0 0
    %284 = vmatpush1.bf16.xpose.msra.mxu0 %v260
    %285 = vmatprep.subr.bf16.mxu0 0
    %286 = vmatpush1.bf16.xpose.msra.mxu0 0
    %287 = vmatprep.subr.bf16.mxu0 0
    %288 = vmatpush1.bf16.xpose.msra.mxu0 0
    %289 = vmatprep.subr.bf16.mxu0 0
    %290 = vmatpush1.bf16.xpose.msra.mxu0 0
    %291 = vmatprep.subr.bf16.mxu0 0
    %292 = vmatpush1.bf16.xpose.msra.mxu0 0
    %293 = vmatprep.subr.bf16.mxu0 0
    %294 = vmatpush1.bf16.xpose.msra.mxu0 0
    %295 = vmatprep.subr.bf16.mxu0 0
    %296 = vmatpush1.bf16.xpose.msra.mxu0 0
    %297 = vmatprep.subr.bf16.mxu0 0
    %298 = vmatpush1.bf16.xpose.msra.mxu0 0
    %299 = vmatprep.subr.bf16.mxu0 0
    %300 = vmatpush1.bf16.xpose.msra.mxu0 0
    %301 = vmatprep.mubr.bf16.mxu0 0
    %302 = vmatmul.mubr.bf16.gmra.mrb[0].mxu0 %v205
    %v303 = vpop.f32.mrb[0].mxu0
    %v304 = vadd.f32 0.0, %v303
    %v305 = vpop.f32.mrb[0].mxu0
    %v306 = vpop.f32.mrb[0].mxu0
    %v307 = vadd.f32 0.0, %v306
    %v308 = vpop.f32.mrb[0].mxu0
    %309 = vmatprep.mubr.bf16.mxu0 0
    %310 = vmatmul.mubr.bf16.gmra.mrb[0].mxu0 %v206
    %v311 = vpop.f32.mrb[0].mxu0
    %v312 = vadd.f32 0.0, %v311
    %v313 = vpop.f32.mrb[0].mxu0
    %v314 = vpop.f32.mrb[0].mxu0
    %v315 = vadd.f32 0.0, %v314
    %v316 = vpop.f32.mrb[0].mxu0
    %317 = vmatprep.mubr.bf16.mxu0 0
    %318 = vmatmul.mubr.bf16.gmra.mrb[0].mxu0 %v207
    %v319 = vpop.f32.mrb[0].mxu0
    %v320 = vadd.f32 0.0, %v319
    %v321 = vpop.f32.mrb[0].mxu0
    %v322 = vpop.f32.mrb[0].mxu0
    %v323 = vadd.f32 0.0, %v322
    %v324 = vpop.f32.mrb[0].mxu0
    %325 = vmatprep.mubr.bf16.mxu0 0
    %326 = vmatmul.mubr.bf16.gmra.mrb[0].mxu0 %v208
    %v327 = vpop.f32.mrb[0].mxu0
    %v328 = vadd.f32 0.0, %v327
    %v329 = vpop.f32.mrb[0].mxu0
    %v330 = vpop.f32.mrb[0].mxu0
    %v331 = vadd.f32 0.0, %v330
    %v332 = vpop.f32.mrb[0].mxu0
    %333 = vmatprep.mubr.bf16.mxu0 0
    %334 = vmatmul.mubr.bf16.gmra.mrb[0].mxu0 %v209
    %v335 = vpop.f32.mrb[0].mxu0
    %v336 = vadd.f32 0.0, %v335
    %v337 = vpop.f32.mrb[0].mxu0
    %v338 = vpop.f32.mrb[0].mxu0
    %v339 = vadd.f32 0.0, %v338
    %v340 = vpop.f32.mrb[0].mxu0
    %341 = vmatprep.mubr.bf16.mxu0 0
    %342 = vmatmul.mubr.bf16.gmra.mrb[0].mxu0 %v210
    %v343 = vpop.f32.mrb[0].mxu0
    %v344 = vadd.f32 0.0, %v343
    %v345 = vpop.f32.mrb[0].mxu0
    %v346 = vpop.f32.mrb[0].mxu0
    %v347 = vadd.f32 0.0, %v346
    %v348 = vpop.f32.mrb[0].mxu0
    %349 = vmatprep.mubr.bf16.mxu0 0
    %350 = vmatmul.mubr.bf16.gmra.mrb[0].mxu0 %v211
    %v351 = vpop.f32.mrb[0].mxu0
    %v352 = vadd.f32 0.0, %v351
    %v353 = vpop.f32.mrb[0].mxu0
    %v354 = vpop.f32.mrb[0].mxu0
    %v355 = vadd.f32 0.0, %v354
    %v356 = vpop.f32.mrb[0].mxu0
    %357 = vmatprep.mubr.bf16.mxu0 0
    %358 = vmatmul.mubr.bf16.gmra.mrb[0].mxu0 %v212
    %v359 = vpop.f32.mrb[0].mxu0
    %v360 = vadd.f32 0.0, %v359
    %v361 = vpop.f32.mrb[0].mxu0
    %v362 = vpop.f32.mrb[0].mxu0
    %v363 = vadd.f32 0.0, %v362
    %v364 = vpop.f32.mrb[0].mxu0
    %365 = vdwg.mxu0
    %v366 = vmul.f32 %v304, 14.285714
    %v367 = vmul.f32 %v307, 14.285714
    %v368 = vmul.f32 %v312, 14.285714
    %v369 = vmul.f32 %v315, 14.285714
    %v370 = vmul.f32 %v320, 14.285714
    %v371 = vmul.f32 %v323, 14.285714
    %v372 = vmul.f32 %v328, 14.285714
    %v373 = vmul.f32 %v331, 14.285714
    %v374 = vmul.f32 %v336, 14.285714
    %v375 = vmul.f32 %v339, 14.285714
    %v376 = vmul.f32 %v344, 14.285714
    %v377 = vmul.f32 %v347, 14.285714
    %v378 = vmul.f32 %v352, 14.285714
    %v379 = vmul.f32 %v355, 14.285714
    %v380 = vmul.f32 %v360, 14.285714
    %v381 = vmul.f32 %v363, 14.285714
    %v382 = vld [vmem:[#allocation11] sm:$0xff]
    %v383 = vld [vmem:[#allocation11 + $0x8] sm:$0xff]
    %v384 = vld [vmem:[#allocation11 + $0x10] sm:$0xff]
    %v385 = vld [vmem:[#allocation11 + $0x18] sm:$0xff]
    %v386 = vld [vmem:[#allocation11 + $0x20] sm:$0xff]
    %v387 = vld [vmem:[#allocation11 + $0x28] sm:$0xff]
    %v388 = vld [vmem:[#allocation11 + $0x30] sm:$0xff]
    %v389 = vld [vmem:[#allocation11 + $0x38] sm:$0xff]
    %v390 = vld [vmem:[#allocation11 + $0x40] sm:$0xff]
    %v391 = vld [vmem:[#allocation11 + $0x48] sm:$0xff]
    %v392 = vld [vmem:[#allocation11 + $0x50] sm:$0xff]
    %v393 = vld [vmem:[#allocation11 + $0x58] sm:$0xff]
    %v394 = vld [vmem:[#allocation11 + $0x60] sm:$0xff]
    %v395 = vld [vmem:[#allocation11 + $0x68] sm:$0xff]
    %v396 = vld [vmem:[#allocation11 + $0x70] sm:$0xff]
    %v397 = vld [vmem:[#allocation11 + $0x78] sm:$0xff]
    %v398 = vld [vmem:[#allocation12] sm:$0x1]
    %399 = vset.pattern.permute.xlu0 0
    %400 = vperm.xlu0 %399, %v382
    %v401 = vpop.permute.xlu0 %400
    %402 = vset.pattern.permute.xlu0 0
    %403 = vperm.xlu0 %402, %v383
    %v404 = vpop.permute.xlu0 %403
    %405 = vset.pattern.permute.xlu0 0
    %406 = vperm.xlu0 %405, %v384
    %v407 = vpop.permute.xlu0 %406
    %408 = vset.pattern.permute.xlu0 0
    %409 = vperm.xlu0 %408, %v385
    %v410 = vpop.permute.xlu0 %409
    %411 = vset.pattern.permute.xlu0 0
    %412 = vperm.xlu0 %411, %v386
    %v413 = vpop.permute.xlu0 %412
    %414 = vset.pattern.permute.xlu0 0
    %415 = vperm.xlu0 %414, %v387
    %v416 = vpop.permute.xlu0 %415
    %417 = vset.pattern.permute.xlu0 0
    %418 = vperm.xlu0 %417, %v388
    %v419 = vpop.permute.xlu0 %418
    %420 = vset.pattern.permute.xlu0 0
    %421 = vperm.xlu0 %420, %v389
    %v422 = vpop.permute.xlu0 %421
    %423 = vset.pattern.permute.xlu0 0
    %424 = vperm.xlu0 %423, %v390
    %v425 = vpop.permute.xlu0 %424
    %426 = vset.pattern.permute.xlu0 0
    %427 = vperm.xlu0 %426, %v391
    %v428 = vpop.permute.xlu0 %427
    %429 = vset.pattern.permute.xlu0 0
    %430 = vperm.xlu0 %429, %v392
    %v431 = vpop.permute.xlu0 %430
    %432 = vset.pattern.permute.xlu0 0
    %433 = vperm.xlu0 %432, %v393
    %v434 = vpop.permute.xlu0 %433
    %435 = vset.pattern.permute.xlu0 0
    %436 = vperm.xlu0 %435, %v394
    %v437 = vpop.permute.xlu0 %436
    %438 = vset.pattern.permute.xlu0 0
    %439 = vperm.xlu0 %438, %v395
    %v440 = vpop.permute.xlu0 %439
    %441 = vset.pattern.permute.xlu0 0
    %442 = vperm.xlu0 %441, %v396
    %v443 = vpop.permute.xlu0 %442
    %444 = vset.pattern.permute.xlu0 0
    %445 = vperm.xlu0 %444, %v397
    %v446 = vpop.permute.xlu0 %445
    %v447 = vlaneseq
    %v448 = vshrl.u32 %v447, 7
    %v449 = vsub.s32 0, %v448
    %v450 = vrot.slane %v398, %v449
    %vm451 = vcmp.eq.s32.totalorder %v401, %v450
    %vm452 = vcmp.eq.s32.totalorder %v404, %v450
    %vm453 = vcmp.eq.s32.totalorder %v407, %v450
    %vm454 = vcmp.eq.s32.totalorder %v410, %v450
    %vm455 = vcmp.eq.s32.totalorder %v413, %v450
    %vm456 = vcmp.eq.s32.totalorder %v416, %v450
    %vm457 = vcmp.eq.s32.totalorder %v419, %v450
    %vm458 = vcmp.eq.s32.totalorder %v422, %v450
    %vm459 = vcmp.eq.s32.totalorder %v425, %v450
    %vm460 = vcmp.eq.s32.totalorder %v428, %v450
    %vm461 = vcmp.eq.s32.totalorder %v431, %v450
    %vm462 = vcmp.eq.s32.totalorder %v434, %v450
    %vm463 = vcmp.eq.s32.totalorder %v437, %v450
    %vm464 = vcmp.eq.s32.totalorder %v440, %v450
    %vm465 = vcmp.eq.s32.totalorder %v443, %v450
    %vm466 = vcmp.eq.s32.totalorder %v446, %v450
    %s467 = smul.u32 0, 128
    %s468 = smul.u32 0, 128
    %s469 = sadd.s32 %s468, 128
    %p470 = scmp.lt.s32.totalorder %s467, %s469
    %s471 = sadd.s32 %s467, 128
    %p472 = scmp.lt.s32.totalorder %s468, %s471
    %p473 = pnand %p470, %p472
    %p474 = pneg %p473
    %p475 = scmp.gt.s32.totalorder %s469, 16
    %p476 = por %p474, %p475
    // Predicated region
    $region38: #{tpu_custom_call.1} parent=1 // pred_check
      %p477 = pneg %p476
    $region39: #{tpu_custom_call.1} parent=1 // pred_check_branch
      %479 = sbr.rel (%p477) target = $region41
    $region40: #{tpu_custom_call.1} parent=1 // pred_region
      %v480 = vlaneseq
      %v481 = vshrl.u32 %v480, 7
      %v482 = vadd.s32 %v481, 8
      %v483 = vadd.s32 %v481, 16
      %v484 = vadd.s32 %v481, 24
      %v485 = vadd.s32 %v481, 32
      %v486 = vadd.s32 %v481, 40
      %v487 = vadd.s32 %v481, 48
      %v488 = vadd.s32 %v481, 56
      %v489 = vadd.s32 %v481, 64
      %v490 = vadd.s32 %v481, 72
      %v491 = vadd.s32 %v481, 80
      %v492 = vadd.s32 %v481, 88
      %v493 = vadd.s32 %v481, 96
      %v494 = vadd.s32 %v481, 104
      %v495 = vadd.s32 %v481, 112
      %v496 = vadd.s32 %v481, 120
      %v497 = vstv %s467
      %v498 = vadd.s32 %v497, %v481
      %v499 = vadd.s32 %v497, %v482
      %v500 = vadd.s32 %v497, %v483
      %v501 = vadd.s32 %v497, %v484
      %v502 = vadd.s32 %v497, %v485
      %v503 = vadd.s32 %v497, %v486
      %v504 = vadd.s32 %v497, %v487
      %v505 = vadd.s32 %v497, %v488
      %v506 = vadd.s32 %v497, %v489
      %v507 = vadd.s32 %v497, %v490
      %v508 = vadd.s32 %v497, %v491
      %v509 = vadd.s32 %v497, %v492
      %v510 = vadd.s32 %v497, %v493
      %v511 = vadd.s32 %v497, %v494
      %v512 = vadd.s32 %v497, %v495
      %v513 = vadd.s32 %v497, %v496
      %v514 = vlaneseq
      %v515 = vand.u32 %v514, 127
      %v516 = vstv %s468
      %v517 = vadd.s32 %v516, %v515
      %vm518 = vcmp.lt.s32.totalorder %v517, 16
      %vm519 = vcmp.ne.s32.totalorder %v498, %v517
      %vm520 = vcmp.ne.s32.totalorder %v499, %v517
      %vm521 = vcmp.ne.s32.totalorder %v500, %v517
      %vm522 = vcmp.ne.s32.totalorder %v501, %v517
      %vm523 = vcmp.ne.s32.totalorder %v502, %v517
      %vm524 = vcmp.ne.s32.totalorder %v503, %v517
      %vm525 = vcmp.ne.s32.totalorder %v504, %v517
      %vm526 = vcmp.ne.s32.totalorder %v505, %v517
      %vm527 = vcmp.ne.s32.totalorder %v506, %v517
      %vm528 = vcmp.ne.s32.totalorder %v507, %v517
      %vm529 = vcmp.ne.s32.totalorder %v508, %v517
      %vm530 = vcmp.ne.s32.totalorder %v509, %v517
      %vm531 = vcmp.ne.s32.totalorder %v510, %v517
      %vm532 = vcmp.ne.s32.totalorder %v511, %v517
      %vm533 = vcmp.ne.s32.totalorder %v512, %v517
      %vm534 = vcmp.ne.s32.totalorder %v513, %v517
      %v535 = vsel %vm518, 1, 0
      %vm536 = vcmp.eq.s32.totalorder %v535, 1
      %vm537 = vmand %vm536, %vm519
      %vm538 = vmand %vm536, %vm520
      %vm539 = vmand %vm536, %vm521
      %vm540 = vmand %vm536, %vm522
      %vm541 = vmand %vm536, %vm523
      %vm542 = vmand %vm536, %vm524
      %vm543 = vmand %vm536, %vm525
      %vm544 = vmand %vm536, %vm526
      %vm545 = vmand %vm536, %vm527
      %vm546 = vmand %vm536, %vm528
      %vm547 = vmand %vm536, %vm529
      %vm548 = vmand %vm536, %vm530
      %vm549 = vmand %vm536, %vm531
      %vm550 = vmand %vm536, %vm532
      %vm551 = vmand %vm536, %vm533
      %vm552 = vmand %vm536, %vm534
      %vm553 = vmand %vm451, %vm537
      %vm554 = vmand %vm452, %vm538
      %vm555 = vmand %vm453, %vm539
      %vm556 = vmand %vm454, %vm540
      %vm557 = vmand %vm455, %vm541
      %vm558 = vmand %vm456, %vm542
      %vm559 = vmand %vm457, %vm543
      %vm560 = vmand %vm458, %vm544
      %vm561 = vmand %vm459, %vm545
      %vm562 = vmand %vm460, %vm546
      %vm563 = vmand %vm461, %vm547
      %vm564 = vmand %vm462, %vm548
      %vm565 = vmand %vm463, %vm549
      %vm566 = vmand %vm464, %vm550
      %vm567 = vmand %vm465, %vm551
      %vm568 = vmand %vm466, %vm552
      %v569 = vsel %vm553, 1, 0
      %v570 = vsel %vm554, 1, 0
      %v571 = vsel %vm555, 1, 0
      %v572 = vsel %vm556, 1, 0
      %v573 = vsel %vm557, 1, 0
      %v574 = vsel %vm558, 1, 0
      %v575 = vsel %vm559, 1, 0
      %v576 = vsel %vm560, 1, 0
      %v577 = vsel %vm561, 1, 0
      %v578 = vsel %vm562, 1, 0
      %v579 = vsel %vm563, 1, 0
      %v580 = vsel %vm564, 1, 0
      %v581 = vsel %vm565, 1, 0
      %v582 = vsel %vm566, 1, 0
      %v583 = vsel %vm567, 1, 0
      %v584 = vsel %vm568, 1, 0
      %v585 = vcvt.s32.f32 %v569
      %v586 = vcvt.s32.f32 %v570
      %v587 = vcvt.s32.f32 %v571
      %v588 = vcvt.s32.f32 %v572
      %v589 = vcvt.s32.f32 %v573
      %v590 = vcvt.s32.f32 %v574
      %v591 = vcvt.s32.f32 %v575
      %v592 = vcvt.s32.f32 %v576
      %v593 = vcvt.s32.f32 %v577
      %v594 = vcvt.s32.f32 %v578
      %v595 = vcvt.s32.f32 %v579
      %v596 = vcvt.s32.f32 %v580
      %v597 = vcvt.s32.f32 %v581
      %v598 = vcvt.s32.f32 %v582
      %v599 = vcvt.s32.f32 %v583
      %v600 = vcvt.s32.f32 %v584
      %v601 = vsel %vm536, %v366, -inf
      %v602 = vsel %vm536, %v367, -inf
      %v603 = vsel %vm536, %v368, -inf
      %v604 = vsel %vm536, %v369, -inf
      %v605 = vsel %vm536, %v370, -inf
      %v606 = vsel %vm536, %v371, -inf
      %v607 = vsel %vm536, %v372, -inf
      %v608 = vsel %vm536, %v373, -inf
      %v609 = vsel %vm536, %v374, -inf
      %v610 = vsel %vm536, %v375, -inf
      %v611 = vsel %vm536, %v376, -inf
      %v612 = vsel %vm536, %v377, -inf
      %v613 = vsel %vm536, %v378, -inf
      %v614 = vsel %vm536, %v379, -inf
      %v615 = vsel %vm536, %v380, -inf
      %v616 = vsel %vm536, %v381, -inf
      %617 = vmax.xlane.f32.xlu0 %v601
      %v618 = vpop.xlane.xlu0 %617
      %619 = vmax.xlane.f32.xlu0 %v602
      %v620 = vpop.xlane.xlu0 %619
      %621 = vmax.xlane.f32.xlu0 %v603
      %v622 = vpop.xlane.xlu0 %621
      %623 = vmax.xlane.f32.xlu0 %v604
      %v624 = vpop.xlane.xlu0 %623
      %625 = vmax.xlane.f32.xlu0 %v605
      %v626 = vpop.xlane.xlu0 %625
      %627 = vmax.xlane.f32.xlu0 %v606
      %v628 = vpop.xlane.xlu0 %627
      %629 = vmax.xlane.f32.xlu0 %v607
      %v630 = vpop.xlane.xlu0 %629
      %631 = vmax.xlane.f32.xlu0 %v608
      %v632 = vpop.xlane.xlu0 %631
      %633 = vmax.xlane.f32.xlu0 %v609
      %v634 = vpop.xlane.xlu0 %633
      %635 = vmax.xlane.f32.xlu0 %v610
      %v636 = vpop.xlane.xlu0 %635
      %637 = vmax.xlane.f32.xlu0 %v611
      %v638 = vpop.xlane.xlu0 %637
      %639 = vmax.xlane.f32.xlu0 %v612
      %v640 = vpop.xlane.xlu0 %639
      %641 = vmax.xlane.f32.xlu0 %v613
      %v642 = vpop.xlane.xlu0 %641
      %643 = vmax.xlane.f32.xlu0 %v614
      %v644 = vpop.xlane.xlu0 %643
      %645 = vmax.xlane.f32.xlu0 %v615
      %v646 = vpop.xlane.xlu0 %645
      %647 = vmax.xlane.f32.xlu0 %v616
      %v648 = vpop.xlane.xlu0 %647
      %v649 = vld [vmem:[#allocation2] sm:$0xff]
      %v650 = vld [vmem:[#allocation2 + $0x8] sm:$0xff]
      %v651 = vld [vmem:[#allocation2 + $0x10] sm:$0xff]
      %v652 = vld [vmem:[#allocation2 + $0x18] sm:$0xff]
      %v653 = vld [vmem:[#allocation2 + $0x20] sm:$0xff]
      %v654 = vld [vmem:[#allocation2 + $0x28] sm:$0xff]
      %v655 = vld [vmem:[#allocation2 + $0x30] sm:$0xff]
      %v656 = vld [vmem:[#allocation2 + $0x38] sm:$0xff]
      %v657 = vld [vmem:[#allocation2 + $0x40] sm:$0xff]
      %v658 = vld [vmem:[#allocation2 + $0x48] sm:$0xff]
      %v659 = vld [vmem:[#allocation2 + $0x50] sm:$0xff]
      %v660 = vld [vmem:[#allocation2 + $0x58] sm:$0xff]
      %v661 = vld [vmem:[#allocation2 + $0x60] sm:$0xff]
      %v662 = vld [vmem:[#allocation2 + $0x68] sm:$0xff]
      %v663 = vld [vmem:[#allocation2 + $0x70] sm:$0xff]
      %v664 = vld [vmem:[#allocation2 + $0x78] sm:$0xff]
      %v665 = vmax.f32 %v649, %v618
      %v666 = vmax.f32 %v650, %v620
      %v667 = vmax.f32 %v651, %v622
      %v668 = vmax.f32 %v652, %v624
      %v669 = vmax.f32 %v653, %v626
      %v670 = vmax.f32 %v654, %v628
      %v671 = vmax.f32 %v655, %v630
      %v672 = vmax.f32 %v656, %v632
      %v673 = vmax.f32 %v657, %v634
      %v674 = vmax.f32 %v658, %v636
      %v675 = vmax.f32 %v659, %v638
      %v676 = vmax.f32 %v660, %v640
      %v677 = vmax.f32 %v661, %v642
      %v678 = vmax.f32 %v662, %v644
      %v679 = vmax.f32 %v663, %v646
      %v680 = vmax.f32 %v664, %v648
      %v681 = vsub.f32 %v649, %v665
      %v682 = vsub.f32 %v650, %v666
      %v683 = vsub.f32 %v651, %v667
      %v684 = vsub.f32 %v652, %v668
      %v685 = vsub.f32 %v653, %v669
      %v686 = vsub.f32 %v654, %v670
      %v687 = vsub.f32 %v655, %v671
      %v688 = vsub.f32 %v656, %v672
      %v689 = vsub.f32 %v657, %v673
      %v690 = vsub.f32 %v658, %v674
      %v691 = vsub.f32 %v659, %v675
      %v692 = vsub.f32 %v660, %v676
      %v693 = vsub.f32 %v661, %v677
      %v694 = vsub.f32 %v662, %v678
      %v695 = vsub.f32 %v663, %v679
      %v696 = vsub.f32 %v664, %v680
      %v697 = vmul.f32 %v681, 1.442695
      %v698 = vpow.pop %v697
      %v699 = vmul.f32 %v682, 1.442695
      %v700 = vpow.pop %v699
      %v701 = vmul.f32 %v683, 1.442695
      %v702 = vpow.pop %v701
      %v703 = vmul.f32 %v684, 1.442695
      %v704 = vpow.pop %v703
      %v705 = vmul.f32 %v685, 1.442695
      %v706 = vpow.pop %v705
      %v707 = vmul.f32 %v686, 1.442695
      %v708 = vpow.pop %v707
      %v709 = vmul.f32 %v687, 1.442695
      %v710 = vpow.pop %v709
      %v711 = vmul.f32 %v688, 1.442695
      %v712 = vpow.pop %v711
      %v713 = vmul.f32 %v689, 1.442695
      %v714 = vpow.pop %v713
      %v715 = vmul.f32 %v690, 1.442695
      %v716 = vpow.pop %v715
      %v717 = vmul.f32 %v691, 1.442695
      %v718 = vpow.pop %v717
      %v719 = vmul.f32 %v692, 1.442695
      %v720 = vpow.pop %v719
      %v721 = vmul.f32 %v693, 1.442695
      %v722 = vpow.pop %v721
      %v723 = vmul.f32 %v694, 1.442695
      %v724 = vpow.pop %v723
      %v725 = vmul.f32 %v695, 1.442695
      %v726 = vpow.pop %v725
      %v727 = vmul.f32 %v696, 1.442695
      %v728 = vpow.pop %v727
      %v729 = vsel %vm537, %v366, -inf
      %v730 = vsel %vm538, %v367, -inf
      %v731 = vsel %vm539, %v368, -inf
      %v732 = vsel %vm540, %v369, -inf
      %v733 = vsel %vm541, %v370, -inf
      %v734 = vsel %vm542, %v371, -inf
      %v735 = vsel %vm543, %v372, -inf
      %v736 = vsel %vm544, %v373, -inf
      %v737 = vsel %vm545, %v374, -inf
      %v738 = vsel %vm546, %v375, -inf
      %v739 = vsel %vm547, %v376, -inf
      %v740 = vsel %vm548, %v377, -inf
      %v741 = vsel %vm549, %v378, -inf
      %v742 = vsel %vm550, %v379, -inf
      %v743 = vsel %vm551, %v380, -inf
      %v744 = vsel %vm552, %v381, -inf
      %746 = vset.pattern.permute.xlu0 0
      %747 = vperm.xlu0 %746, %v665
      %v748 = vpop.permute.xlu0 %747
      %751 = vset.pattern.permute.xlu0 0
      %752 = vperm.xlu0 %751, %v666
      %v753 = vpop.permute.xlu0 %752
      %756 = vset.pattern.permute.xlu0 0
      %757 = vperm.xlu0 %756, %v667
      %v758 = vpop.permute.xlu0 %757
      %761 = vset.pattern.permute.xlu0 0
      %762 = vperm.xlu0 %761, %v668
      %v763 = vpop.permute.xlu0 %762
      %766 = vset.pattern.permute.xlu0 0
      %767 = vperm.xlu0 %766, %v669
      %v768 = vpop.permute.xlu0 %767
      %771 = vset.pattern.permute.xlu0 0
      %772 = vperm.xlu0 %771, %v670
      %v773 = vpop.permute.xlu0 %772
      %776 = vset.pattern.permute.xlu0 0
      %777 = vperm.xlu0 %776, %v671
      %v778 = vpop.permute.xlu0 %777
      %781 = vset.pattern.permute.xlu0 0
      %782 = vperm.xlu0 %781, %v672
      %v783 = vpop.permute.xlu0 %782
      %786 = vset.pattern.permute.xlu0 0
      %787 = vperm.xlu0 %786, %v673
      %v788 = vpop.permute.xlu0 %787
      %791 = vset.pattern.permute.xlu0 0
      %792 = vperm.xlu0 %791, %v674
      %v793 = vpop.permute.xlu0 %792
      %796 = vset.pattern.permute.xlu0 0
      %797 = vperm.xlu0 %796, %v675
      %v798 = vpop.permute.xlu0 %797
      %801 = vset.pattern.permute.xlu0 0
      %802 = vperm.xlu0 %801, %v676
      %v803 = vpop.permute.xlu0 %802
      %806 = vset.pattern.permute.xlu0 0
      %807 = vperm.xlu0 %806, %v677
      %v808 = vpop.permute.xlu0 %807
      %811 = vset.pattern.permute.xlu0 0
      %812 = vperm.xlu0 %811, %v678
      %v813 = vpop.permute.xlu0 %812
      %816 = vset.pattern.permute.xlu0 0
      %817 = vperm.xlu0 %816, %v679
      %v818 = vpop.permute.xlu0 %817
      %821 = vset.pattern.permute.xlu0 0
      %822 = vperm.xlu0 %821, %v680
      %v823 = vpop.permute.xlu0 %822
      %v825 = vsub.f32 %v729, %v748
      %v826 = vsub.f32 %v730, %v753
      %v827 = vsub.f32 %v731, %v758
      %v828 = vsub.f32 %v732, %v763
      %v829 = vsub.f32 %v733, %v768
      %v830 = vsub.f32 %v734, %v773
      %v831 = vsub.f32 %v735, %v778
      %v832 = vsub.f32 %v736, %v783
      %v833 = vsub.f32 %v737, %v788
      %v834 = vsub.f32 %v738, %v793
      %v835 = vsub.f32 %v739, %v798
      %v836 = vsub.f32 %v740, %v803
      %v837 = vsub.f32 %v741, %v808
      %v838 = vsub.f32 %v742, %v813
      %v839 = vsub.f32 %v743, %v818
      %v840 = vsub.f32 %v744, %v823
      %v841 = vmul.f32 %v825, 1.442695
      %v842 = vpow.pop %v841
      %v843 = vmul.f32 %v826, 1.442695
      %v844 = vpow.pop %v843
      %v845 = vmul.f32 %v827, 1.442695
      %v846 = vpow.pop %v845
      %v847 = vmul.f32 %v828, 1.442695
      %v848 = vpow.pop %v847
      %v849 = vmul.f32 %v829, 1.442695
      %v850 = vpow.pop %v849
      %v851 = vmul.f32 %v830, 1.442695
      %v852 = vpow.pop %v851
      %v853 = vmul.f32 %v831, 1.442695
      %v854 = vpow.pop %v853
      %v855 = vmul.f32 %v832, 1.442695
      %v856 = vpow.pop %v855
      %v857 = vmul.f32 %v833, 1.442695
      %v858 = vpow.pop %v857
      %v859 = vmul.f32 %v834, 1.442695
      %v860 = vpow.pop %v859
      %v861 = vmul.f32 %v835, 1.442695
      %v862 = vpow.pop %v861
      %v863 = vmul.f32 %v836, 1.442695
      %v864 = vpow.pop %v863
      %v865 = vmul.f32 %v837, 1.442695
      %v866 = vpow.pop %v865
      %v867 = vmul.f32 %v838, 1.442695
      %v868 = vpow.pop %v867
      %v869 = vmul.f32 %v839, 1.442695
      %v870 = vpow.pop %v869
      %v871 = vmul.f32 %v840, 1.442695
      %v872 = vpow.pop %v871
      %v873 = vld [vmem:[#allocation3] sm:$0xff]
      %v874 = vld [vmem:[#allocation3 + $0x8] sm:$0xff]
      %v875 = vld [vmem:[#allocation3 + $0x10] sm:$0xff]
      %v876 = vld [vmem:[#allocation3 + $0x18] sm:$0xff]
      %v877 = vld [vmem:[#allocation3 + $0x20] sm:$0xff]
      %v878 = vld [vmem:[#allocation3 + $0x28] sm:$0xff]
      %v879 = vld [vmem:[#allocation3 + $0x30] sm:$0xff]
      %v880 = vld [vmem:[#allocation3 + $0x38] sm:$0xff]
      %v881 = vld [vmem:[#allocation3 + $0x40] sm:$0xff]
      %v882 = vld [vmem:[#allocation3 + $0x48] sm:$0xff]
      %v883 = vld [vmem:[#allocation3 + $0x50] sm:$0xff]
      %v884 = vld [vmem:[#allocation3 + $0x58] sm:$0xff]
      %v885 = vld [vmem:[#allocation3 + $0x60] sm:$0xff]
      %v886 = vld [vmem:[#allocation3 + $0x68] sm:$0xff]
      %v887 = vld [vmem:[#allocation3 + $0x70] sm:$0xff]
      %v888 = vld [vmem:[#allocation3 + $0x78] sm:$0xff]
      %v889 = vmul.f32 %v873, %v698
      %v890 = vmul.f32 %v874, %v700
      %v891 = vmul.f32 %v875, %v702
      %v892 = vmul.f32 %v876, %v704
      %v893 = vmul.f32 %v877, %v706
      %v894 = vmul.f32 %v878, %v708
      %v895 = vmul.f32 %v879, %v710
      %v896 = vmul.f32 %v880, %v712
      %v897 = vmul.f32 %v881, %v714
      %v898 = vmul.f32 %v882, %v716
      %v899 = vmul.f32 %v883, %v718
      %v900 = vmul.f32 %v884, %v720
      %v901 = vmul.f32 %v885, %v722
      %v902 = vmul.f32 %v886, %v724
      %v903 = vmul.f32 %v887, %v726
      %v904 = vmul.f32 %v888, %v728
      %905 = vadd.xlane.f32.xlu0 %v842
      %v906 = vpop.xlane.xlu0 %905
      %907 = vadd.xlane.f32.xlu0 %v844
      %v908 = vpop.xlane.xlu0 %907
      %909 = vadd.xlane.f32.xlu0 %v846
      %v910 = vpop.xlane.xlu0 %909
      %911 = vadd.xlane.f32.xlu0 %v848
      %v912 = vpop.xlane.xlu0 %911
      %913 = vadd.xlane.f32.xlu0 %v850
      %v914 = vpop.xlane.xlu0 %913
      %915 = vadd.xlane.f32.xlu0 %v852
      %v916 = vpop.xlane.xlu0 %915
      %917 = vadd.xlane.f32.xlu0 %v854
      %v918 = vpop.xlane.xlu0 %917
      %919 = vadd.xlane.f32.xlu0 %v856
      %v920 = vpop.xlane.xlu0 %919
      %921 = vadd.xlane.f32.xlu0 %v858
      %v922 = vpop.xlane.xlu0 %921
      %923 = vadd.xlane.f32.xlu0 %v860
      %v924 = vpop.xlane.xlu0 %923
      %925 = vadd.xlane.f32.xlu0 %v862
      %v926 = vpop.xlane.xlu0 %925
      %927 = vadd.xlane.f32.xlu0 %v864
      %v928 = vpop.xlane.xlu0 %927
      %929 = vadd.xlane.f32.xlu0 %v866
      %v930 = vpop.xlane.xlu0 %929
      %931 = vadd.xlane.f32.xlu0 %v868
      %v932 = vpop.xlane.xlu0 %931
      %933 = vadd.xlane.f32.xlu0 %v870
      %v934 = vpop.xlane.xlu0 %933
      %935 = vadd.xlane.f32.xlu0 %v872
      %v936 = vpop.xlane.xlu0 %935
      %v937 = vadd.f32 %v889, %v906
      %v938 = vadd.f32 %v890, %v908
      %v939 = vadd.f32 %v891, %v910
      %v940 = vadd.f32 %v892, %v912
      %v941 = vadd.f32 %v893, %v914
      %v942 = vadd.f32 %v894, %v916
      %v943 = vadd.f32 %v895, %v918
      %v944 = vadd.f32 %v896, %v920
      %v945 = vadd.f32 %v897, %v922
      %v946 = vadd.f32 %v898, %v924
      %v947 = vadd.f32 %v899, %v926
      %v948 = vadd.f32 %v900, %v928
      %v949 = vadd.f32 %v901, %v930
      %v950 = vadd.f32 %v902, %v932
      %v951 = vadd.f32 %v903, %v934
      %v952 = vadd.f32 %v904, %v936
      %vm953 = vcmask 7168
      %954 = vst.msk [vmem:[#allocation3] sm:$0xff] %vm953, %v937
      %955 = vst.msk [vmem:[#allocation3 + $0x8] sm:$0xff] %vm953, %v938
      %956 = vst.msk [vmem:[#allocation3 + $0x10] sm:$0xff] %vm953, %v939
      %957 = vst.msk [vmem:[#allocation3 + $0x18] sm:$0xff] %vm953, %v940
      %958 = vst.msk [vmem:[#allocation3 + $0x20] sm:$0xff] %vm953, %v941
      %959 = vst.msk [vmem:[#allocation3 + $0x28] sm:$0xff] %vm953, %v942
      %960 = vst.msk [vmem:[#allocation3 + $0x30] sm:$0xff] %vm953, %v943
      %961 = vst.msk [vmem:[#allocation3 + $0x38] sm:$0xff] %vm953, %v944
      %962 = vst.msk [vmem:[#allocation3 + $0x40] sm:$0xff] %vm953, %v945
      %963 = vst.msk [vmem:[#allocation3 + $0x48] sm:$0xff] %vm953, %v946
      %964 = vst.msk [vmem:[#allocation3 + $0x50] sm:$0xff] %vm953, %v947
      %965 = vst.msk [vmem:[#allocation3 + $0x58] sm:$0xff] %vm953, %v948
      %966 = vst.msk [vmem:[#allocation3 + $0x60] sm:$0xff] %vm953, %v949
      %967 = vst.msk [vmem:[#allocation3 + $0x68] sm:$0xff] %vm953, %v950
      %968 = vst.msk [vmem:[#allocation3 + $0x70] sm:$0xff] %vm953, %v951
      %969 = vst.msk [vmem:[#allocation3 + $0x78] sm:$0xff] %vm953, %v952
      %970 = vst.msk [vmem:[#allocation2] sm:$0xff] %vm953, %v665
      %971 = vst.msk [vmem:[#allocation2 + $0x8] sm:$0xff] %vm953, %v666
      %972 = vst.msk [vmem:[#allocation2 + $0x10] sm:$0xff] %vm953, %v667
      %973 = vst.msk [vmem:[#allocation2 + $0x18] sm:$0xff] %vm953, %v668
      %974 = vst.msk [vmem:[#allocation2 + $0x20] sm:$0xff] %vm953, %v669
      %975 = vst.msk [vmem:[#allocation2 + $0x28] sm:$0xff] %vm953, %v670
      %976 = vst.msk [vmem:[#allocation2 + $0x30] sm:$0xff] %vm953, %v671
      %977 = vst.msk [vmem:[#allocation2 + $0x38] sm:$0xff] %vm953, %v672
      %978 = vst.msk [vmem:[#allocation2 + $0x40] sm:$0xff] %vm953, %v673
      %979 = vst.msk [vmem:[#allocation2 + $0x48] sm:$0xff] %vm953, %v674
      %980 = vst.msk [vmem:[#allocation2 + $0x50] sm:$0xff] %vm953, %v675
      %981 = vst.msk [vmem:[#allocation2 + $0x58] sm:$0xff] %vm953, %v676
      %982 = vst.msk [vmem:[#allocation2 + $0x60] sm:$0xff] %vm953, %v677
      %983 = vst.msk [vmem:[#allocation2 + $0x68] sm:$0xff] %vm953, %v678
      %984 = vst.msk [vmem:[#allocation2 + $0x70] sm:$0xff] %vm953, %v679
      %985 = vst.msk [vmem:[#allocation2 + $0x78] sm:$0xff] %vm953, %v680
      %v986 = vld [vmem:[#allocation4] sm:$0xff]
      %v987 = vld [vmem:[#allocation4 + $0x8] sm:$0xff]
      %v988 = vld [vmem:[#allocation4 + $0x10] sm:$0xff]
      %v989 = vld [vmem:[#allocation4 + $0x18] sm:$0xff]
      %v990 = vld [vmem:[#allocation4 + $0x20] sm:$0xff]
      %v991 = vld [vmem:[#allocation4 + $0x28] sm:$0xff]
      %v992 = vld [vmem:[#allocation4 + $0x30] sm:$0xff]
      %v993 = vld [vmem:[#allocation4 + $0x38] sm:$0xff]
      %v994 = vld [vmem:[#allocation4 + $0x40] sm:$0xff]
      %v995 = vld [vmem:[#allocation4 + $0x48] sm:$0xff]
      %v996 = vld [vmem:[#allocation4 + $0x50] sm:$0xff]
      %v997 = vld [vmem:[#allocation4 + $0x58] sm:$0xff]
      %v998 = vld [vmem:[#allocation4 + $0x60] sm:$0xff]
      %v999 = vld [vmem:[#allocation4 + $0x68] sm:$0xff]
      %v1000 = vld [vmem:[#allocation4 + $0x70] sm:$0xff]
      %v1001 = vld [vmem:[#allocation4 + $0x78] sm:$0xff]
      %1002 = vadd.xlane.f32.xlu0 %v585
      %v1003 = vpop.xlane.xlu0 %1002
      %1004 = vadd.xlane.f32.xlu0 %v586
      %v1005 = vpop.xlane.xlu0 %1004
      %1006 = vadd.xlane.f32.xlu0 %v587
      %v1007 = vpop.xlane.xlu0 %1006
      %1008 = vadd.xlane.f32.xlu0 %v588
      %v1009 = vpop.xlane.xlu0 %1008
      %1010 = vadd.xlane.f32.xlu0 %v589
      %v1011 = vpop.xlane.xlu0 %1010
      %1012 = vadd.xlane.f32.xlu0 %v590
      %v1013 = vpop.xlane.xlu0 %1012
      %1014 = vadd.xlane.f32.xlu0 %v591
      %v1015 = vpop.xlane.xlu0 %1014
      %1016 = vadd.xlane.f32.xlu0 %v592
      %v1017 = vpop.xlane.xlu0 %1016
      %1018 = vadd.xlane.f32.xlu0 %v593
      %v1019 = vpop.xlane.xlu0 %1018
      %1020 = vadd.xlane.f32.xlu0 %v594
      %v1021 = vpop.xlane.xlu0 %1020
      %1022 = vadd.xlane.f32.xlu0 %v595
      %v1023 = vpop.xlane.xlu0 %1022
      %1024 = vadd.xlane.f32.xlu0 %v596
      %v1025 = vpop.xlane.xlu0 %1024
      %1026 = vadd.xlane.f32.xlu0 %v597
      %v1027 = vpop.xlane.xlu0 %1026
      %1028 = vadd.xlane.f32.xlu0 %v598
      %v1029 = vpop.xlane.xlu0 %1028
      %1030 = vadd.xlane.f32.xlu0 %v599
      %v1031 = vpop.xlane.xlu0 %1030
      %1032 = vadd.xlane.f32.xlu0 %v600
      %v1033 = vpop.xlane.xlu0 %1032
      %v1034 = vadd.f32 %v986, %v1003
      %v1035 = vadd.f32 %v987, %v1005
      %v1036 = vadd.f32 %v988, %v1007
      %v1037 = vadd.f32 %v989, %v1009
      %v1038 = vadd.f32 %v990, %v1011
      %v1039 = vadd.f32 %v991, %v1013
      %v1040 = vadd.f32 %v992, %v1015
      %v1041 = vadd.f32 %v993, %v1017
      %v1042 = vadd.f32 %v994, %v1019
      %v1043 = vadd.f32 %v995, %v1021
      %v1044 = vadd.f32 %v996, %v1023
      %v1045 = vadd.f32 %v997, %v1025
      %v1046 = vadd.f32 %v998, %v1027
      %v1047 = vadd.f32 %v999, %v1029
      %v1048 = vadd.f32 %v1000, %v1031
      %v1049 = vadd.f32 %v1001, %v1033
      %1050 = vst.msk [vmem:[#allocation4] sm:$0xff] %vm953, %v1034
      %1051 = vst.msk [vmem:[#allocation4 + $0x8] sm:$0xff] %vm953, %v1035
      %1052 = vst.msk [vmem:[#allocation4 + $0x10] sm:$0xff] %vm953, %v1036
      %1053 = vst.msk [vmem:[#allocation4 + $0x18] sm:$0xff] %vm953, %v1037
      %1054 = vst.msk [vmem:[#allocation4 + $0x20] sm:$0xff] %vm953, %v1038
      %1055 = vst.msk [vmem:[#allocation4 + $0x28] sm:$0xff] %vm953, %v1039
      %1056 = vst.msk [vmem:[#allocation4 + $0x30] sm:$0xff] %vm953, %v1040
      %1057 = vst.msk [vmem:[#allocation4 + $0x38] sm:$0xff] %vm953, %v1041
      %1058 = vst.msk [vmem:[#allocation4 + $0x40] sm:$0xff] %vm953, %v1042
      %1059 = vst.msk [vmem:[#allocation4 + $0x48] sm:$0xff] %vm953, %v1043
      %1060 = vst.msk [vmem:[#allocation4 + $0x50] sm:$0xff] %vm953, %v1044
      %1061 = vst.msk [vmem:[#allocation4 + $0x58] sm:$0xff] %vm953, %v1045
      %1062 = vst.msk [vmem:[#allocation4 + $0x60] sm:$0xff] %vm953, %v1046
      %1063 = vst.msk [vmem:[#allocation4 + $0x68] sm:$0xff] %vm953, %v1047
      %1064 = vst.msk [vmem:[#allocation4 + $0x70] sm:$0xff] %vm953, %v1048
      %1065 = vst.msk [vmem:[#allocation4 + $0x78] sm:$0xff] %vm953, %v1049
      %v1066 = vld [vmem:[#allocation5] sm:$0xff]
      %v1067 = vld [vmem:[#allocation5 + $0x8] sm:$0xff]
      %v1068 = vld [vmem:[#allocation5 + $0x10] sm:$0xff]
      %v1069 = vld [vmem:[#allocation5 + $0x18] sm:$0xff]
      %v1070 = vld [vmem:[#allocation5 + $0x20] sm:$0xff]
      %v1071 = vld [vmem:[#allocation5 + $0x28] sm:$0xff]
      %v1072 = vld [vmem:[#allocation5 + $0x30] sm:$0xff]
      %v1073 = vld [vmem:[#allocation5 + $0x38] sm:$0xff]
      %v1074 = vld [vmem:[#allocation5 + $0x40] sm:$0xff]
      %v1075 = vld [vmem:[#allocation5 + $0x48] sm:$0xff]
      %v1076 = vld [vmem:[#allocation5 + $0x50] sm:$0xff]
      %v1077 = vld [vmem:[#allocation5 + $0x58] sm:$0xff]
      %v1078 = vld [vmem:[#allocation5 + $0x60] sm:$0xff]
      %v1079 = vld [vmem:[#allocation5 + $0x68] sm:$0xff]
      %v1080 = vld [vmem:[#allocation5 + $0x70] sm:$0xff]
      %v1081 = vld [vmem:[#allocation5 + $0x78] sm:$0xff]
      %v1082 = vmul.f32 %v585, %v366
      %v1083 = vmul.f32 %v586, %v367
      %v1084 = vmul.f32 %v587, %v368
      %v1085 = vmul.f32 %v588, %v369
      %v1086 = vmul.f32 %v589, %v370
      %v1087 = vmul.f32 %v590, %v371
      %v1088 = vmul.f32 %v591, %v372
      %v1089 = vmul.f32 %v592, %v373
      %v1090 = vmul.f32 %v593, %v374
      %v1091 = vmul.f32 %v594, %v375
      %v1092 = vmul.f32 %v595, %v376
      %v1093 = vmul.f32 %v596, %v377
      %v1094 = vmul.f32 %v597, %v378
      %v1095 = vmul.f32 %v598, %v379
      %v1096 = vmul.f32 %v599, %v380
      %v1097 = vmul.f32 %v600, %v381
      %1098 = vadd.xlane.f32.xlu0 %v1082
      %v1099 = vpop.xlane.xlu0 %1098
      %1100 = vadd.xlane.f32.xlu0 %v1083
      %v1101 = vpop.xlane.xlu0 %1100
      %1102 = vadd.xlane.f32.xlu0 %v1084
      %v1103 = vpop.xlane.xlu0 %1102
      %1104 = vadd.xlane.f32.xlu0 %v1085
      %v1105 = vpop.xlane.xlu0 %1104
      %1106 = vadd.xlane.f32.xlu0 %v1086
      %v1107 = vpop.xlane.xlu0 %1106
      %1108 = vadd.xlane.f32.xlu0 %v1087
      %v1109 = vpop.xlane.xlu0 %1108
      %1110 = vadd.xlane.f32.xlu0 %v1088
      %v1111 = vpop.xlane.xlu0 %1110
      %1112 = vadd.xlane.f32.xlu0 %v1089
      %v1113 = vpop.xlane.xlu0 %1112
      %1114 = vadd.xlane.f32.xlu0 %v1090
      %v1115 = vpop.xlane.xlu0 %1114
      %1116 = vadd.xlane.f32.xlu0 %v1091
      %v1117 = vpop.xlane.xlu0 %1116
      %1118 = vadd.xlane.f32.xlu0 %v1092
      %v1119 = vpop.xlane.xlu0 %1118
      %1120 = vadd.xlane.f32.xlu0 %v1093
      %v1121 = vpop.xlane.xlu0 %1120
      %1122 = vadd.xlane.f32.xlu0 %v1094
      %v1123 = vpop.xlane.xlu0 %1122
      %1124 = vadd.xlane.f32.xlu0 %v1095
      %v1125 = vpop.xlane.xlu0 %1124
      %1126 = vadd.xlane.f32.xlu0 %v1096
      %v1127 = vpop.xlane.xlu0 %1126
      %1128 = vadd.xlane.f32.xlu0 %v1097
      %v1129 = vpop.xlane.xlu0 %1128
      %v1130 = vadd.f32 %v1066, %v1099
      %v1131 = vadd.f32 %v1067, %v1101
      %v1132 = vadd.f32 %v1068, %v1103
      %v1133 = vadd.f32 %v1069, %v1105
      %v1134 = vadd.f32 %v1070, %v1107
      %v1135 = vadd.f32 %v1071, %v1109
      %v1136 = vadd.f32 %v1072, %v1111
      %v1137 = vadd.f32 %v1073, %v1113
      %v1138 = vadd.f32 %v1074, %v1115
      %v1139 = vadd.f32 %v1075, %v1117
      %v1140 = vadd.f32 %v1076, %v1119
      %v1141 = vadd.f32 %v1077, %v1121
      %v1142 = vadd.f32 %v1078, %v1123
      %v1143 = vadd.f32 %v1079, %v1125
      %v1144 = vadd.f32 %v1080, %v1127
      %v1145 = vadd.f32 %v1081, %v1129
      %1146 = vst.msk [vmem:[#allocation5] sm:$0xff] %vm953, %v1130
      %1147 = vst.msk [vmem:[#allocation5 + $0x8] sm:$0xff] %vm953, %v1131
      %1148 = vst.msk [vmem:[#allocation5 + $0x10] sm:$0xff] %vm953, %v1132
      %1149 = vst.msk [vmem:[#allocation5 + $0x18] sm:$0xff] %vm953, %v1133
      %1150 = vst.msk [vmem:[#allocation5 + $0x20] sm:$0xff] %vm953, %v1134
      %1151 = vst.msk [vmem:[#allocation5 + $0x28] sm:$0xff] %vm953, %v1135
      %1152 = vst.msk [vmem:[#allocation5 + $0x30] sm:$0xff] %vm953, %v1136
      %1153 = vst.msk [vmem:[#allocation5 + $0x38] sm:$0xff] %vm953, %v1137
      %1154 = vst.msk [vmem:[#allocation5 + $0x40] sm:$0xff] %vm953, %v1138
      %1155 = vst.msk [vmem:[#allocation5 + $0x48] sm:$0xff] %vm953, %v1139
      %1156 = vst.msk [vmem:[#allocation5 + $0x50] sm:$0xff] %vm953, %v1140
      %1157 = vst.msk [vmem:[#allocation5 + $0x58] sm:$0xff] %vm953, %v1141
      %1158 = vst.msk [vmem:[#allocation5 + $0x60] sm:$0xff] %vm953, %v1142
      %1159 = vst.msk [vmem:[#allocation5 + $0x68] sm:$0xff] %vm953, %v1143
      %1160 = vst.msk [vmem:[#allocation5 + $0x70] sm:$0xff] %vm953, %v1144
      %1161 = vst.msk [vmem:[#allocation5 + $0x78] sm:$0xff] %vm953, %v1145
    $region41: #{tpu_custom_call.1} parent=1 // pred_fallthru
      _
    %p1162 = pneg %p476
    // Predicated region
    $region42: #{tpu_custom_call.1} parent=1 // pred_check
      _
    $region43: #{tpu_custom_call.1} parent=1 // pred_check_branch
      %1164 = sbr.rel (%p476) target = $region45
    $region44: #{tpu_custom_call.1} parent=1 // pred_region
      %1165 = vmax.xlane.f32.xlu0 %v366
      %v1166 = vpop.xlane.xlu0 %1165
      %1167 = vmax.xlane.f32.xlu0 %v367
      %v1168 = vpop.xlane.xlu0 %1167
      %1169 = vmax.xlane.f32.xlu0 %v368
      %v1170 = vpop.xlane.xlu0 %1169
      %1171 = vmax.xlane.f32.xlu0 %v369
      %v1172 = vpop.xlane.xlu0 %1171
      %1173 = vmax.xlane.f32.xlu0 %v370
      %v1174 = vpop.xlane.xlu0 %1173
      %1175 = vmax.xlane.f32.xlu0 %v371
      %v1176 = vpop.xlane.xlu0 %1175
      %1177 = vmax.xlane.f32.xlu0 %v372
      %v1178 = vpop.xlane.xlu0 %1177
      %1179 = vmax.xlane.f32.xlu0 %v373
      %v1180 = vpop.xlane.xlu0 %1179
      %1181 = vmax.xlane.f32.xlu0 %v374
      %v1182 = vpop.xlane.xlu0 %1181
      %1183 = vmax.xlane.f32.xlu0 %v375
      %v1184 = vpop.xlane.xlu0 %1183
      %1185 = vmax.xlane.f32.xlu0 %v376
      %v1186 = vpop.xlane.xlu0 %1185
      %1187 = vmax.xlane.f32.xlu0 %v377
      %v1188 = vpop.xlane.xlu0 %1187
      %1189 = vmax.xlane.f32.xlu0 %v378
      %v1190 = vpop.xlane.xlu0 %1189
      %1191 = vmax.xlane.f32.xlu0 %v379
      %v1192 = vpop.xlane.xlu0 %1191
      %1193 = vmax.xlane.f32.xlu0 %v380
      %v1194 = vpop.xlane.xlu0 %1193
      %1195 = vmax.xlane.f32.xlu0 %v381
      %v1196 = vpop.xlane.xlu0 %1195
      %v1197 = vld [vmem:[#allocation2] sm:$0xff]
      %v1198 = vld [vmem:[#allocation2 + $0x8] sm:$0xff]
      %v1199 = vld [vmem:[#allocation2 + $0x10] sm:$0xff]
      %v1200 = vld [vmem:[#allocation2 + $0x18] sm:$0xff]
      %v1201 = vld [vmem:[#allocation2 + $0x20] sm:$0xff]
      %v1202 = vld [vmem:[#allocation2 + $0x28] sm:$0xff]
      %v1203 = vld [vmem:[#allocation2 + $0x30] sm:$0xff]
      %v1204 = vld [vmem:[#allocation2 + $0x38] sm:$0xff]
      %v1205 = vld [vmem:[#allocation2 + $0x40] sm:$0xff]
      %v1206 = vld [vmem:[#allocation2 + $0x48] sm:$0xff]
      %v1207 = vld [vmem:[#allocation2 + $0x50] sm:$0xff]
      %v1208 = vld [vmem:[#allocation2 + $0x58] sm:$0xff]
      %v1209 = vld [vmem:[#allocation2 + $0x60] sm:$0xff]
      %v1210 = vld [vmem:[#allocation2 + $0x68] sm:$0xff]
      %v1211 = vld [vmem:[#allocation2 + $0x70] sm:$0xff]
      %v1212 = vld [vmem:[#allocation2 + $0x78] sm:$0xff]
      %v1213 = vmax.f32 %v1197, %v1166
      %v1214 = vmax.f32 %v1198, %v1168
      %v1215 = vmax.f32 %v1199, %v1170
      %v1216 = vmax.f32 %v1200, %v1172
      %v1217 = vmax.f32 %v1201, %v1174
      %v1218 = vmax.f32 %v1202, %v1176
      %v1219 = vmax.f32 %v1203, %v1178
      %v1220 = vmax.f32 %v1204, %v1180
      %v1221 = vmax.f32 %v1205, %v1182
      %v1222 = vmax.f32 %v1206, %v1184
      %v1223 = vmax.f32 %v1207, %v1186
      %v1224 = vmax.f32 %v1208, %v1188
      %v1225 = vmax.f32 %v1209, %v1190
      %v1226 = vmax.f32 %v1210, %v1192
      %v1227 = vmax.f32 %v1211, %v1194
      %v1228 = vmax.f32 %v1212, %v1196
      %v1229 = vsub.f32 %v1197, %v1213
      %v1230 = vsub.f32 %v1198, %v1214
      %v1231 = vsub.f32 %v1199, %v1215
      %v1232 = vsub.f32 %v1200, %v1216
      %v1233 = vsub.f32 %v1201, %v1217
      %v1234 = vsub.f32 %v1202, %v1218
      %v1235 = vsub.f32 %v1203, %v1219
      %v1236 = vsub.f32 %v1204, %v1220
      %v1237 = vsub.f32 %v1205, %v1221
      %v1238 = vsub.f32 %v1206, %v1222
      %v1239 = vsub.f32 %v1207, %v1223
      %v1240 = vsub.f32 %v1208, %v1224
      %v1241 = vsub.f32 %v1209, %v1225
      %v1242 = vsub.f32 %v1210, %v1226
      %v1243 = vsub.f32 %v1211, %v1227
      %v1244 = vsub.f32 %v1212, %v1228
      %v1245 = vmul.f32 %v1229, 1.442695
      %v1246 = vpow.pop %v1245
      %v1247 = vmul.f32 %v1230, 1.442695
      %v1248 = vpow.pop %v1247
      %v1249 = vmul.f32 %v1231, 1.442695
      %v1250 = vpow.pop %v1249
      %v1251 = vmul.f32 %v1232, 1.442695
      %v1252 = vpow.pop %v1251
      %v1253 = vmul.f32 %v1233, 1.442695
      %v1254 = vpow.pop %v1253
      %v1255 = vmul.f32 %v1234, 1.442695
      %v1256 = vpow.pop %v1255
      %v1257 = vmul.f32 %v1235, 1.442695
      %v1258 = vpow.pop %v1257
      %v1259 = vmul.f32 %v1236, 1.442695
      %v1260 = vpow.pop %v1259
      %v1261 = vmul.f32 %v1237, 1.442695
      %v1262 = vpow.pop %v1261
      %v1263 = vmul.f32 %v1238, 1.442695
      %v1264 = vpow.pop %v1263
      %v1265 = vmul.f32 %v1239, 1.442695
      %v1266 = vpow.pop %v1265
      %v1267 = vmul.f32 %v1240, 1.442695
      %v1268 = vpow.pop %v1267
      %v1269 = vmul.f32 %v1241, 1.442695
      %v1270 = vpow.pop %v1269
      %v1271 = vmul.f32 %v1242, 1.442695
      %v1272 = vpow.pop %v1271
      %v1273 = vmul.f32 %v1243, 1.442695
      %v1274 = vpow.pop %v1273
      %v1275 = vmul.f32 %v1244, 1.442695
      %v1276 = vpow.pop %v1275
      %1278 = vset.pattern.permute.xlu0 0
      %1279 = vperm.xlu0 %1278, %v1213
      %v1280 = vpop.permute.xlu0 %1279
      %1283 = vset.pattern.permute.xlu0 0
      %1284 = vperm.xlu0 %1283, %v1214
      %v1285 = vpop.permute.xlu0 %1284
      %1288 = vset.pattern.permute.xlu0 0
      %1289 = vperm.xlu0 %1288, %v1215
      %v1290 = vpop.permute.xlu0 %1289
      %1293 = vset.pattern.permute.xlu0 0
      %1294 = vperm.xlu0 %1293, %v1216
      %v1295 = vpop.permute.xlu0 %1294
      %1298 = vset.pattern.permute.xlu0 0
      %1299 = vperm.xlu0 %1298, %v1217
      %v1300 = vpop.permute.xlu0 %1299
      %1303 = vset.pattern.permute.xlu0 0
      %1304 = vperm.xlu0 %1303, %v1218
      %v1305 = vpop.permute.xlu0 %1304
      %1308 = vset.pattern.permute.xlu0 0
      %1309 = vperm.xlu0 %1308, %v1219
      %v1310 = vpop.permute.xlu0 %1309
      %1313 = vset.pattern.permute.xlu0 0
      %1314 = vperm.xlu0 %1313, %v1220
      %v1315 = vpop.permute.xlu0 %1314
      %1318 = vset.pattern.permute.xlu0 0
      %1319 = vperm.xlu0 %1318, %v1221
      %v1320 = vpop.permute.xlu0 %1319
      %1323 = vset.pattern.permute.xlu0 0
      %1324 = vperm.xlu0 %1323, %v1222
      %v1325 = vpop.permute.xlu0 %1324
      %1328 = vset.pattern.permute.xlu0 0
      %1329 = vperm.xlu0 %1328, %v1223
      %v1330 = vpop.permute.xlu0 %1329
      %1333 = vset.pattern.permute.xlu0 0
      %1334 = vperm.xlu0 %1333, %v1224
      %v1335 = vpop.permute.xlu0 %1334
      %1338 = vset.pattern.permute.xlu0 0
      %1339 = vperm.xlu0 %1338, %v1225
      %v1340 = vpop.permute.xlu0 %1339
      %1343 = vset.pattern.permute.xlu0 0
      %1344 = vperm.xlu0 %1343, %v1226
      %v1345 = vpop.permute.xlu0 %1344
      %1348 = vset.pattern.permute.xlu0 0
      %1349 = vperm.xlu0 %1348, %v1227
      %v1350 = vpop.permute.xlu0 %1349
      %1353 = vset.pattern.permute.xlu0 0
      %1354 = vperm.xlu0 %1353, %v1228
      %v1355 = vpop.permute.xlu0 %1354
      %v1357 = vsub.f32 %v366, %v1280
      %v1358 = vsub.f32 %v367, %v1285
      %v1359 = vsub.f32 %v368, %v1290
      %v1360 = vsub.f32 %v369, %v1295
      %v1361 = vsub.f32 %v370, %v1300
      %v1362 = vsub.f32 %v371, %v1305
      %v1363 = vsub.f32 %v372, %v1310
      %v1364 = vsub.f32 %v373, %v1315
      %v1365 = vsub.f32 %v374, %v1320
      %v1366 = vsub.f32 %v375, %v1325
      %v1367 = vsub.f32 %v376, %v1330
      %v1368 = vsub.f32 %v377, %v1335
      %v1369 = vsub.f32 %v378, %v1340
      %v1370 = vsub.f32 %v379, %v1345
      %v1371 = vsub.f32 %v380, %v1350
      %v1372 = vsub.f32 %v381, %v1355
      %v1373 = vmul.f32 %v1357, 1.442695
      %v1374 = vpow.pop %v1373
      %v1375 = vmul.f32 %v1358, 1.442695
      %v1376 = vpow.pop %v1375
      %v1377 = vmul.f32 %v1359, 1.442695
      %v1378 = vpow.pop %v1377
      %v1379 = vmul.f32 %v1360, 1.442695
      %v1380 = vpow.pop %v1379
      %v1381 = vmul.f32 %v1361, 1.442695
      %v1382 = vpow.pop %v1381
      %v1383 = vmul.f32 %v1362, 1.442695
      %v1384 = vpow.pop %v1383
      %v1385 = vmul.f32 %v1363, 1.442695
      %v1386 = vpow.pop %v1385
      %v1387 = vmul.f32 %v1364, 1.442695
      %v1388 = vpow.pop %v1387
      %v1389 = vmul.f32 %v1365, 1.442695
      %v1390 = vpow.pop %v1389
      %v1391 = vmul.f32 %v1366, 1.442695
      %v1392 = vpow.pop %v1391
      %v1393 = vmul.f32 %v1367, 1.442695
      %v1394 = vpow.pop %v1393
      %v1395 = vmul.f32 %v1368, 1.442695
      %v1396 = vpow.pop %v1395
      %v1397 = vmul.f32 %v1369, 1.442695
      %v1398 = vpow.pop %v1397
      %v1399 = vmul.f32 %v1370, 1.442695
      %v1400 = vpow.pop %v1399
      %v1401 = vmul.f32 %v1371, 1.442695
      %v1402 = vpow.pop %v1401
      %v1403 = vmul.f32 %v1372, 1.442695
      %v1404 = vpow.pop %v1403
      %v1405 = vsel %vm451, 1, 0
      %v1406 = vsel %vm452, 1, 0
      %v1407 = vsel %vm453, 1, 0
      %v1408 = vsel %vm454, 1, 0
      %v1409 = vsel %vm455, 1, 0
      %v1410 = vsel %vm456, 1, 0
      %v1411 = vsel %vm457, 1, 0
      %v1412 = vsel %vm458, 1, 0
      %v1413 = vsel %vm459, 1, 0
      %v1414 = vsel %vm460, 1, 0
      %v1415 = vsel %vm461, 1, 0
      %v1416 = vsel %vm462, 1, 0
      %v1417 = vsel %vm463, 1, 0
      %v1418 = vsel %vm464, 1, 0
      %v1419 = vsel %vm465, 1, 0
      %v1420 = vsel %vm466, 1, 0
      %v1421 = vcvt.s32.f32 %v1405
      %v1422 = vcvt.s32.f32 %v1406
      %v1423 = vcvt.s32.f32 %v1407
      %v1424 = vcvt.s32.f32 %v1408
      %v1425 = vcvt.s32.f32 %v1409
      %v1426 = vcvt.s32.f32 %v1410
      %v1427 = vcvt.s32.f32 %v1411
      %v1428 = vcvt.s32.f32 %v1412
      %v1429 = vcvt.s32.f32 %v1413
      %v1430 = vcvt.s32.f32 %v1414
      %v1431 = vcvt.s32.f32 %v1415
      %v1432 = vcvt.s32.f32 %v1416
      %v1433 = vcvt.s32.f32 %v1417
      %v1434 = vcvt.s32.f32 %v1418
      %v1435 = vcvt.s32.f32 %v1419
      %v1436 = vcvt.s32.f32 %v1420
      %v1437 = vld [vmem:[#allocation3] sm:$0xff]
      %v1438 = vld [vmem:[#allocation3 + $0x8] sm:$0xff]
      %v1439 = vld [vmem:[#allocation3 + $0x10] sm:$0xff]
      %v1440 = vld [vmem:[#allocation3 + $0x18] sm:$0xff]
      %v1441 = vld [vmem:[#allocation3 + $0x20] sm:$0xff]
      %v1442 = vld [vmem:[#allocation3 + $0x28] sm:$0xff]
      %v1443 = vld [vmem:[#allocation3 + $0x30] sm:$0xff]
      %v1444 = vld [vmem:[#allocation3 + $0x38] sm:$0xff]
      %v1445 = vld [vmem:[#allocation3 + $0x40] sm:$0xff]
      %v1446 = vld [vmem:[#allocation3 + $0x48] sm:$0xff]
      %v1447 = vld [vmem:[#allocation3 + $0x50] sm:$0xff]
      %v1448 = vld [vmem:[#allocation3 + $0x58] sm:$0xff]
      %v1449 = vld [vmem:[#allocation3 + $0x60] sm:$0xff]
      %v1450 = vld [vmem:[#allocation3 + $0x68] sm:$0xff]
      %v1451 = vld [vmem:[#allocation3 + $0x70] sm:$0xff]
      %v1452 = vld [vmem:[#allocation3 + $0x78] sm:$0xff]
      %v1453 = vmul.f32 %v1437, %v1246
      %v1454 = vmul.f32 %v1438, %v1248
      %v1455 = vmul.f32 %v1439, %v1250
      %v1456 = vmul.f32 %v1440, %v1252
      %v1457 = vmul.f32 %v1441, %v1254
      %v1458 = vmul.f32 %v1442, %v1256
      %v1459 = vmul.f32 %v1443, %v1258
      %v1460 = vmul.f32 %v1444, %v1260
      %v1461 = vmul.f32 %v1445, %v1262
      %v1462 = vmul.f32 %v1446, %v1264
      %v1463 = vmul.f32 %v1447, %v1266
      %v1464 = vmul.f32 %v1448, %v1268
      %v1465 = vmul.f32 %v1449, %v1270
      %v1466 = vmul.f32 %v1450, %v1272
      %v1467 = vmul.f32 %v1451, %v1274
      %v1468 = vmul.f32 %v1452, %v1276
      %1469 = vadd.xlane.f32.xlu0 %v1374
      %v1470 = vpop.xlane.xlu0 %1469
      %1471 = vadd.xlane.f32.xlu0 %v1376
      %v1472 = vpop.xlane.xlu0 %1471
      %1473 = vadd.xlane.f32.xlu0 %v1378
      %v1474 = vpop.xlane.xlu0 %1473
      %1475 = vadd.xlane.f32.xlu0 %v1380
      %v1476 = vpop.xlane.xlu0 %1475
      %1477 = vadd.xlane.f32.xlu0 %v1382
      %v1478 = vpop.xlane.xlu0 %1477
      %1479 = vadd.xlane.f32.xlu0 %v1384
      %v1480 = vpop.xlane.xlu0 %1479
      %1481 = vadd.xlane.f32.xlu0 %v1386
      %v1482 = vpop.xlane.xlu0 %1481
      %1483 = vadd.xlane.f32.xlu0 %v1388
      %v1484 = vpop.xlane.xlu0 %1483
      %1485 = vadd.xlane.f32.xlu0 %v1390
      %v1486 = vpop.xlane.xlu0 %1485
      %1487 = vadd.xlane.f32.xlu0 %v1392
      %v1488 = vpop.xlane.xlu0 %1487
      %1489 = vadd.xlane.f32.xlu0 %v1394
      %v1490 = vpop.xlane.xlu0 %1489
      %1491 = vadd.xlane.f32.xlu0 %v1396
      %v1492 = vpop.xlane.xlu0 %1491
      %1493 = vadd.xlane.f32.xlu0 %v1398
      %v1494 = vpop.xlane.xlu0 %1493
      %1495 = vadd.xlane.f32.xlu0 %v1400
      %v1496 = vpop.xlane.xlu0 %1495
      %1497 = vadd.xlane.f32.xlu0 %v1402
      %v1498 = vpop.xlane.xlu0 %1497
      %1499 = vadd.xlane.f32.xlu0 %v1404
      %v1500 = vpop.xlane.xlu0 %1499
      %v1501 = vadd.f32 %v1453, %v1470
      %v1502 = vadd.f32 %v1454, %v1472
      %v1503 = vadd.f32 %v1455, %v1474
      %v1504 = vadd.f32 %v1456, %v1476
      %v1505 = vadd.f32 %v1457, %v1478
      %v1506 = vadd.f32 %v1458, %v1480
      %v1507 = vadd.f32 %v1459, %v1482
      %v1508 = vadd.f32 %v1460, %v1484
      %v1509 = vadd.f32 %v1461, %v1486
      %v1510 = vadd.f32 %v1462, %v1488
      %v1511 = vadd.f32 %v1463, %v1490
      %v1512 = vadd.f32 %v1464, %v1492
      %v1513 = vadd.f32 %v1465, %v1494
      %v1514 = vadd.f32 %v1466, %v1496
      %v1515 = vadd.f32 %v1467, %v1498
      %v1516 = vadd.f32 %v1468, %v1500
      %vm1517 = vcmask 7168
      %1518 = vst.msk [vmem:[#allocation3] sm:$0xff] %vm1517, %v1501
      %1519 = vst.msk [vmem:[#allocation3 + $0x8] sm:$0xff] %vm1517, %v1502
      %1520 = vst.msk [vmem:[#allocation3 + $0x10] sm:$0xff] %vm1517, %v1503
      %1521 = vst.msk [vmem:[#allocation3 + $0x18] sm:$0xff] %vm1517, %v1504
      %1522 = vst.msk [vmem:[#allocation3 + $0x20] sm:$0xff] %vm1517, %v1505
      %1523 = vst.msk [vmem:[#allocation3 + $0x28] sm:$0xff] %vm1517, %v1506
      %1524 = vst.msk [vmem:[#allocation3 + $0x30] sm:$0xff] %vm1517, %v1507
      %1525 = vst.msk [vmem:[#allocation3 + $0x38] sm:$0xff] %vm1517, %v1508
      %1526 = vst.msk [vmem:[#allocation3 + $0x40] sm:$0xff] %vm1517, %v1509
      %1527 = vst.msk [vmem:[#allocation3 + $0x48] sm:$0xff] %vm1517, %v1510
      %1528 = vst.msk [vmem:[#allocation3 + $0x50] sm:$0xff] %vm1517, %v1511
      %1529 = vst.msk [vmem:[#allocation3 + $0x58] sm:$0xff] %vm1517, %v1512
      %1530 = vst.msk [vmem:[#allocation3 + $0x60] sm:$0xff] %vm1517, %v1513
      %1531 = vst.msk [vmem:[#allocation3 + $0x68] sm:$0xff] %vm1517, %v1514
      %1532 = vst.msk [vmem:[#allocation3 + $0x70] sm:$0xff] %vm1517, %v1515
      %1533 = vst.msk [vmem:[#allocation3 + $0x78] sm:$0xff] %vm1517, %v1516
      %1534 = vst.msk [vmem:[#allocation2] sm:$0xff] %vm1517, %v1213
      %1535 = vst.msk [vmem:[#allocation2 + $0x8] sm:$0xff] %vm1517, %v1214
      %1536 = vst.msk [vmem:[#allocation2 + $0x10] sm:$0xff] %vm1517, %v1215
      %1537 = vst.msk [vmem:[#allocation2 + $0x18] sm:$0xff] %vm1517, %v1216
      %1538 = vst.msk [vmem:[#allocation2 + $0x20] sm:$0xff] %vm1517, %v1217
      %1539 = vst.msk [vmem:[#allocation2 + $0x28] sm:$0xff] %vm1517, %v1218
      %1540 = vst.msk [vmem:[#allocation2 + $0x30] sm:$0xff] %vm1517, %v1219
      %1541 = vst.msk [vmem:[#allocation2 + $0x38] sm:$0xff] %vm1517, %v1220
      %1542 = vst.msk [vmem:[#allocation2 + $0x40] sm:$0xff] %vm1517, %v1221
      %1543 = vst.msk [vmem:[#allocation2 + $0x48] sm:$0xff] %vm1517, %v1222
      %1544 = vst.msk [vmem:[#allocation2 + $0x50] sm:$0xff] %vm1517, %v1223
      %1545 = vst.msk [vmem:[#allocation2 + $0x58] sm:$0xff] %vm1517, %v1224
      %1546 = vst.msk [vmem:[#allocation2 + $0x60] sm:$0xff] %vm1517, %v1225
      %1547 = vst.msk [vmem:[#allocation2 + $0x68] sm:$0xff] %vm1517, %v1226
      %1548 = vst.msk [vmem:[#allocation2 + $0x70] sm:$0xff] %vm1517, %v1227
      %1549 = vst.msk [vmem:[#allocation2 + $0x78] sm:$0xff] %vm1517, %v1228
      %v1550 = vld [vmem:[#allocation4] sm:$0xff]
      %v1551 = vld [vmem:[#allocation4 + $0x8] sm:$0xff]
      %v1552 = vld [vmem:[#allocation4 + $0x10] sm:$0xff]
      %v1553 = vld [vmem:[#allocation4 + $0x18] sm:$0xff]
      %v1554 = vld [vmem:[#allocation4 + $0x20] sm:$0xff]
      %v1555 = vld [vmem:[#allocation4 + $0x28] sm:$0xff]
      %v1556 = vld [vmem:[#allocation4 + $0x30] sm:$0xff]
      %v1557 = vld [vmem:[#allocation4 + $0x38] sm:$0xff]
      %v1558 = vld [vmem:[#allocation4 + $0x40] sm:$0xff]
      %v1559 = vld [vmem:[#allocation4 + $0x48] sm:$0xff]
      %v1560 = vld [vmem:[#allocation4 + $0x50] sm:$0xff]
      %v1561 = vld [vmem:[#allocation4 + $0x58] sm:$0xff]
      %v1562 = vld [vmem:[#allocation4 + $0x60] sm:$0xff]
      %v1563 = vld [vmem:[#allocation4 + $0x68] sm:$0xff]
      %v1564 = vld [vmem:[#allocation4 + $0x70] sm:$0xff]
      %v1565 = vld [vmem:[#allocation4 + $0x78] sm:$0xff]
      %1566 = vadd.xlane.f32.xlu0 %v1421
      %v1567 = vpop.xlane.xlu0 %1566
      %1568 = vadd.xlane.f32.xlu0 %v1422
      %v1569 = vpop.xlane.xlu0 %1568
      %1570 = vadd.xlane.f32.xlu0 %v1423
      %v1571 = vpop.xlane.xlu0 %1570
      %1572 = vadd.xlane.f32.xlu0 %v1424
      %v1573 = vpop.xlane.xlu0 %1572
      %1574 = vadd.xlane.f32.xlu0 %v1425
      %v1575 = vpop.xlane.xlu0 %1574
      %1576 = vadd.xlane.f32.xlu0 %v1426
      %v1577 = vpop.xlane.xlu0 %1576
      %1578 = vadd.xlane.f32.xlu0 %v1427
      %v1579 = vpop.xlane.xlu0 %1578
      %1580 = vadd.xlane.f32.xlu0 %v1428
      %v1581 = vpop.xlane.xlu0 %1580
      %1582 = vadd.xlane.f32.xlu0 %v1429
      %v1583 = vpop.xlane.xlu0 %1582
      %1584 = vadd.xlane.f32.xlu0 %v1430
      %v1585 = vpop.xlane.xlu0 %1584
      %1586 = vadd.xlane.f32.xlu0 %v1431
      %v1587 = vpop.xlane.xlu0 %1586
      %1588 = vadd.xlane.f32.xlu0 %v1432
      %v1589 = vpop.xlane.xlu0 %1588
      %1590 = vadd.xlane.f32.xlu0 %v1433
      %v1591 = vpop.xlane.xlu0 %1590
      %1592 = vadd.xlane.f32.xlu0 %v1434
      %v1593 = vpop.xlane.xlu0 %1592
      %1594 = vadd.xlane.f32.xlu0 %v1435
      %v1595 = vpop.xlane.xlu0 %1594
      %1596 = vadd.xlane.f32.xlu0 %v1436
      %v1597 = vpop.xlane.xlu0 %1596
      %v1598 = vadd.f32 %v1550, %v1567
      %v1599 = vadd.f32 %v1551, %v1569
      %v1600 = vadd.f32 %v1552, %v1571
      %v1601 = vadd.f32 %v1553, %v1573
      %v1602 = vadd.f32 %v1554, %v1575
      %v1603 = vadd.f32 %v1555, %v1577
      %v1604 = vadd.f32 %v1556, %v1579
      %v1605 = vadd.f32 %v1557, %v1581
      %v1606 = vadd.f32 %v1558, %v1583
      %v1607 = vadd.f32 %v1559, %v1585
      %v1608 = vadd.f32 %v1560, %v1587
      %v1609 = vadd.f32 %v1561, %v1589
      %v1610 = vadd.f32 %v1562, %v1591
      %v1611 = vadd.f32 %v1563, %v1593
      %v1612 = vadd.f32 %v1564, %v1595
      %v1613 = vadd.f32 %v1565, %v1597
      %1614 = vst.msk [vmem:[#allocation4] sm:$0xff] %vm1517, %v1598
      %1615 = vst.msk [vmem:[#allocation4 + $0x8] sm:$0xff] %vm1517, %v1599
      %1616 = vst.msk [vmem:[#allocation4 + $0x10] sm:$0xff] %vm1517, %v1600
      %1617 = vst.msk [vmem:[#allocation4 + $0x18] sm:$0xff] %vm1517, %v1601
      %1618 = vst.msk [vmem:[#allocation4 + $0x20] sm:$0xff] %vm1517, %v1602
      %1619 = vst.msk [vmem:[#allocation4 + $0x28] sm:$0xff] %vm1517, %v1603
      %1620 = vst.msk [vmem:[#allocation4 + $0x30] sm:$0xff] %vm1517, %v1604
      %1621 = vst.msk [vmem:[#allocation4 + $0x38] sm:$0xff] %vm1517, %v1605
      %1622 = vst.msk [vmem:[#allocation4 + $0x40] sm:$0xff] %vm1517, %v1606
      %1623 = vst.msk [vmem:[#allocation4 + $0x48] sm:$0xff] %vm1517, %v1607
      %1624 = vst.msk [vmem:[#allocation4 + $0x50] sm:$0xff] %vm1517, %v1608
      %1625 = vst.msk [vmem:[#allocation4 + $0x58] sm:$0xff] %vm1517, %v1609
      %1626 = vst.msk [vmem:[#allocation4 + $0x60] sm:$0xff] %vm1517, %v1610
      %1627 = vst.msk [vmem:[#allocation4 + $0x68] sm:$0xff] %vm1517, %v1611
      %1628 = vst.msk [vmem:[#allocation4 + $0x70] sm:$0xff] %vm1517, %v1612
      %1629 = vst.msk [vmem:[#allocation4 + $0x78] sm:$0xff] %vm1517, %v1613
      %v1630 = vld [vmem:[#allocation5] sm:$0xff]
      %v1631 = vld [vmem:[#allocation5 + $0x8] sm:$0xff]
      %v1632 = vld [vmem:[#allocation5 + $0x10] sm:$0xff]
      %v1633 = vld [vmem:[#allocation5 + $0x18] sm:$0xff]
      %v1634 = vld [vmem:[#allocation5 + $0x20] sm:$0xff]
      %v1635 = vld [vmem:[#allocation5 + $0x28] sm:$0xff]
      %v1636 = vld [vmem:[#allocation5 + $0x30] sm:$0xff]
      %v1637 = vld [vmem:[#allocation5 + $0x38] sm:$0xff]
      %v1638 = vld [vmem:[#allocation5 + $0x40] sm:$0xff]
      %v1639 = vld [vmem:[#allocation5 + $0x48] sm:$0xff]
      %v1640 = vld [vmem:[#allocation5 + $0x50] sm:$0xff]
      %v1641 = vld [vmem:[#allocation5 + $0x58] sm:$0xff]
      %v1642 = vld [vmem:[#allocation5 + $0x60] sm:$0xff]
      %v1643 = vld [vmem:[#allocation5 + $0x68] sm:$0xff]
      %v1644 = vld [vmem:[#allocation5 + $0x70] sm:$0xff]
      %v1645 = vld [vmem:[#allocation5 + $0x78] sm:$0xff]
      %v1646 = vmul.f32 %v1421, %v366
      %v1647 = vmul.f32 %v1422, %v367
      %v1648 = vmul.f32 %v1423, %v368
      %v1649 = vmul.f32 %v1424, %v369
      %v1650 = vmul.f32 %v1425, %v370
      %v1651 = vmul.f32 %v1426, %v371
      %v1652 = vmul.f32 %v1427, %v372
      %v1653 = vmul.f32 %v1428, %v373
      %v1654 = vmul.f32 %v1429, %v374
      %v1655 = vmul.f32 %v1430, %v375
      %v1656 = vmul.f32 %v1431, %v376
      %v1657 = vmul.f32 %v1432, %v377
      %v1658 = vmul.f32 %v1433, %v378
      %v1659 = vmul.f32 %v1434, %v379
      %v1660 = vmul.f32 %v1435, %v380
      %v1661 = vmul.f32 %v1436, %v381
      %1662 = vadd.xlane.f32.xlu0 %v1646
      %v1663 = vpop.xlane.xlu0 %1662
      %1664 = vadd.xlane.f32.xlu0 %v1647
      %v1665 = vpop.xlane.xlu0 %1664
      %1666 = vadd.xlane.f32.xlu0 %v1648
      %v1667 = vpop.xlane.xlu0 %1666
      %1668 = vadd.xlane.f32.xlu0 %v1649
      %v1669 = vpop.xlane.xlu0 %1668
      %1670 = vadd.xlane.f32.xlu0 %v1650
      %v1671 = vpop.xlane.xlu0 %1670
      %1672 = vadd.xlane.f32.xlu0 %v1651
      %v1673 = vpop.xlane.xlu0 %1672
      %1674 = vadd.xlane.f32.xlu0 %v1652
      %v1675 = vpop.xlane.xlu0 %1674
      %1676 = vadd.xlane.f32.xlu0 %v1653
      %v1677 = vpop.xlane.xlu0 %1676
      %1678 = vadd.xlane.f32.xlu0 %v1654
      %v1679 = vpop.xlane.xlu0 %1678
      %1680 = vadd.xlane.f32.xlu0 %v1655
      %v1681 = vpop.xlane.xlu0 %1680
      %1682 = vadd.xlane.f32.xlu0 %v1656
      %v1683 = vpop.xlane.xlu0 %1682
      %1684 = vadd.xlane.f32.xlu0 %v1657
      %v1685 = vpop.xlane.xlu0 %1684
      %1686 = vadd.xlane.f32.xlu0 %v1658
      %v1687 = vpop.xlane.xlu0 %1686
      %1688 = vadd.xlane.f32.xlu0 %v1659
      %v1689 = vpop.xlane.xlu0 %1688
      %1690 = vadd.xlane.f32.xlu0 %v1660
      %v1691 = vpop.xlane.xlu0 %1690
      %1692 = vadd.xlane.f32.xlu0 %v1661
      %v1693 = vpop.xlane.xlu0 %1692
      %v1694 = vadd.f32 %v1630, %v1663
      %v1695 = vadd.f32 %v1631, %v1665
      %v1696 = vadd.f32 %v1632, %v1667
      %v1697 = vadd.f32 %v1633, %v1669
      %v1698 = vadd.f32 %v1634, %v1671
      %v1699 = vadd.f32 %v1635, %v1673
      %v1700 = vadd.f32 %v1636, %v1675
      %v1701 = vadd.f32 %v1637, %v1677
      %v1702 = vadd.f32 %v1638, %v1679
      %v1703 = vadd.f32 %v1639, %v1681
      %v1704 = vadd.f32 %v1640, %v1683
      %v1705 = vadd.f32 %v1641, %v1685
      %v1706 = vadd.f32 %v1642, %v1687
      %v1707 = vadd.f32 %v1643, %v1689
      %v1708 = vadd.f32 %v1644, %v1691
      %v1709 = vadd.f32 %v1645, %v1693
      %1710 = vst.msk [vmem:[#allocation5] sm:$0xff] %vm1517, %v1694
      %1711 = vst.msk [vmem:[#allocation5 + $0x8] sm:$0xff] %vm1517, %v1695
      %1712 = vst.msk [vmem:[#allocation5 + $0x10] sm:$0xff] %vm1517, %v1696
      %1713 = vst.msk [vmem:[#allocation5 + $0x18] sm:$0xff] %vm1517, %v1697
      %1714 = vst.msk [vmem:[#allocation5 + $0x20] sm:$0xff] %vm1517, %v1698
      %1715 = vst.msk [vmem:[#allocation5 + $0x28] sm:$0xff] %vm1517, %v1699
      %1716 = vst.msk [vmem:[#allocation5 + $0x30] sm:$0xff] %vm1517, %v1700
      %1717 = vst.msk [vmem:[#allocation5 + $0x38] sm:$0xff] %vm1517, %v1701
      %1718 = vst.msk [vmem:[#allocation5 + $0x40] sm:$0xff] %vm1517, %v1702
      %1719 = vst.msk [vmem:[#allocation5 + $0x48] sm:$0xff] %vm1517, %v1703
      %1720 = vst.msk [vmem:[#allocation5 + $0x50] sm:$0xff] %vm1517, %v1704
      %1721 = vst.msk [vmem:[#allocation5 + $0x58] sm:$0xff] %vm1517, %v1705
      %1722 = vst.msk [vmem:[#allocation5 + $0x60] sm:$0xff] %vm1517, %v1706
      %1723 = vst.msk [vmem:[#allocation5 + $0x68] sm:$0xff] %vm1517, %v1707
      %1724 = vst.msk [vmem:[#allocation5 + $0x70] sm:$0xff] %vm1517, %v1708
      %1725 = vst.msk [vmem:[#allocation5 + $0x78] sm:$0xff] %vm1517, %v1709
    $region45: #{tpu_custom_call.1} parent=1 // pred_fallthru
      _
    // Predicated region
    $region46: #{tpu_custom_call.1} parent=1 // pred_check
      %p1726 = pneg %p72
    $region47: #{tpu_custom_call.1} parent=1 // pred_check_branch
      %1728 = sbr.rel (%p1726) target = $region49
    $region48: #{tpu_custom_call.1} parent=1 // pred_region
      %v1729 = vld [vmem:[#allocation2] sm:$0xff]
      %v1730 = vld [vmem:[#allocation2 + $0x8] sm:$0xff]
      %v1731 = vld [vmem:[#allocation2 + $0x10] sm:$0xff]
      %v1732 = vld [vmem:[#allocation2 + $0x18] sm:$0xff]
      %v1733 = vld [vmem:[#allocation2 + $0x20] sm:$0xff]
      %v1734 = vld [vmem:[#allocation2 + $0x28] sm:$0xff]
      %v1735 = vld [vmem:[#allocation2 + $0x30] sm:$0xff]
      %v1736 = vld [vmem:[#allocation2 + $0x38] sm:$0xff]
      %v1737 = vld [vmem:[#allocation2 + $0x40] sm:$0xff]
      %v1738 = vld [vmem:[#allocation2 + $0x48] sm:$0xff]
      %v1739 = vld [vmem:[#allocation2 + $0x50] sm:$0xff]
      %v1740 = vld [vmem:[#allocation2 + $0x58] sm:$0xff]
      %v1741 = vld [vmem:[#allocation2 + $0x60] sm:$0xff]
      %v1742 = vld [vmem:[#allocation2 + $0x68] sm:$0xff]
      %v1743 = vld [vmem:[#allocation2 + $0x70] sm:$0xff]
      %v1744 = vld [vmem:[#allocation2 + $0x78] sm:$0xff]
      %v1745 = vld [vmem:[#allocation3] sm:$0xff]
      %v1746 = vld [vmem:[#allocation3 + $0x8] sm:$0xff]
      %v1747 = vld [vmem:[#allocation3 + $0x10] sm:$0xff]
      %v1748 = vld [vmem:[#allocation3 + $0x18] sm:$0xff]
      %v1749 = vld [vmem:[#allocation3 + $0x20] sm:$0xff]
      %v1750 = vld [vmem:[#allocation3 + $0x28] sm:$0xff]
      %v1751 = vld [vmem:[#allocation3 + $0x30] sm:$0xff]
      %v1752 = vld [vmem:[#allocation3 + $0x38] sm:$0xff]
      %v1753 = vld [vmem:[#allocation3 + $0x40] sm:$0xff]
      %v1754 = vld [vmem:[#allocation3 + $0x48] sm:$0xff]
      %v1755 = vld [vmem:[#allocation3 + $0x50] sm:$0xff]
      %v1756 = vld [vmem:[#allocation3 + $0x58] sm:$0xff]
      %v1757 = vld [vmem:[#allocation3 + $0x60] sm:$0xff]
      %v1758 = vld [vmem:[#allocation3 + $0x68] sm:$0xff]
      %v1759 = vld [vmem:[#allocation3 + $0x70] sm:$0xff]
      %v1760 = vld [vmem:[#allocation3 + $0x78] sm:$0xff]
      %v1761 = vlog2.pop %v1745
      %v1762 = vmul.f32 %v1761, 0.6931472
      %v1763 = vlog2.pop %v1746
      %v1764 = vmul.f32 %v1763, 0.6931472
      %v1765 = vlog2.pop %v1747
      %v1766 = vmul.f32 %v1765, 0.6931472
      %v1767 = vlog2.pop %v1748
      %v1768 = vmul.f32 %v1767, 0.6931472
      %v1769 = vlog2.pop %v1749
      %v1770 = vmul.f32 %v1769, 0.6931472
      %v1771 = vlog2.pop %v1750
      %v1772 = vmul.f32 %v1771, 0.6931472
      %v1773 = vlog2.pop %v1751
      %v1774 = vmul.f32 %v1773, 0.6931472
      %v1775 = vlog2.pop %v1752
      %v1776 = vmul.f32 %v1775, 0.6931472
      %v1777 = vlog2.pop %v1753
      %v1778 = vmul.f32 %v1777, 0.6931472
      %v1779 = vlog2.pop %v1754
      %v1780 = vmul.f32 %v1779, 0.6931472
      %v1781 = vlog2.pop %v1755
      %v1782 = vmul.f32 %v1781, 0.6931472
      %v1783 = vlog2.pop %v1756
      %v1784 = vmul.f32 %v1783, 0.6931472
      %v1785 = vlog2.pop %v1757
      %v1786 = vmul.f32 %v1785, 0.6931472
      %v1787 = vlog2.pop %v1758
      %v1788 = vmul.f32 %v1787, 0.6931472
      %v1789 = vlog2.pop %v1759
      %v1790 = vmul.f32 %v1789, 0.6931472
      %v1791 = vlog2.pop %v1760
      %v1792 = vmul.f32 %v1791, 0.6931472
      %v1793 = vadd.f32 %v1729, %v1762
      %v1794 = vadd.f32 %v1730, %v1764
      %v1795 = vadd.f32 %v1731, %v1766
      %v1796 = vadd.f32 %v1732, %v1768
      %v1797 = vadd.f32 %v1733, %v1770
      %v1798 = vadd.f32 %v1734, %v1772
      %v1799 = vadd.f32 %v1735, %v1774
      %v1800 = vadd.f32 %v1736, %v1776
      %v1801 = vadd.f32 %v1737, %v1778
      %v1802 = vadd.f32 %v1738, %v1780
      %v1803 = vadd.f32 %v1739, %v1782
      %v1804 = vadd.f32 %v1740, %v1784
      %v1805 = vadd.f32 %v1741, %v1786
      %v1806 = vadd.f32 %v1742, %v1788
      %v1807 = vadd.f32 %v1743, %v1790
      %v1808 = vadd.f32 %v1744, %v1792
      %v1809 = vld [vmem:[#allocation4] sm:$0xff]
      %v1810 = vld [vmem:[#allocation4 + $0x8] sm:$0xff]
      %v1811 = vld [vmem:[#allocation4 + $0x10] sm:$0xff]
      %v1812 = vld [vmem:[#allocation4 + $0x18] sm:$0xff]
      %v1813 = vld [vmem:[#allocation4 + $0x20] sm:$0xff]
      %v1814 = vld [vmem:[#allocation4 + $0x28] sm:$0xff]
      %v1815 = vld [vmem:[#allocation4 + $0x30] sm:$0xff]
      %v1816 = vld [vmem:[#allocation4 + $0x38] sm:$0xff]
      %v1817 = vld [vmem:[#allocation4 + $0x40] sm:$0xff]
      %v1818 = vld [vmem:[#allocation4 + $0x48] sm:$0xff]
      %v1819 = vld [vmem:[#allocation4 + $0x50] sm:$0xff]
      %v1820 = vld [vmem:[#allocation4 + $0x58] sm:$0xff]
      %v1821 = vld [vmem:[#allocation4 + $0x60] sm:$0xff]
      %v1822 = vld [vmem:[#allocation4 + $0x68] sm:$0xff]
      %v1823 = vld [vmem:[#allocation4 + $0x70] sm:$0xff]
      %v1824 = vld [vmem:[#allocation4 + $0x78] sm:$0xff]
      %vm1825 = vcmp.lt.f32.partialorder %v1809, 1e-06
      %vm1826 = vcmp.lt.f32.partialorder %v1810, 1e-06
      %vm1827 = vcmp.lt.f32.partialorder %v1811, 1e-06
      %vm1828 = vcmp.lt.f32.partialorder %v1812, 1e-06
      %vm1829 = vcmp.lt.f32.partialorder %v1813, 1e-06
      %vm1830 = vcmp.lt.f32.partialorder %v1814, 1e-06
      %vm1831 = vcmp.lt.f32.partialorder %v1815, 1e-06
      %vm1832 = vcmp.lt.f32.partialorder %v1816, 1e-06
      %vm1833 = vcmp.lt.f32.partialorder %v1817, 1e-06
      %vm1834 = vcmp.lt.f32.partialorder %v1818, 1e-06
      %vm1835 = vcmp.lt.f32.partialorder %v1819, 1e-06
      %vm1836 = vcmp.lt.f32.partialorder %v1820, 1e-06
      %vm1837 = vcmp.lt.f32.partialorder %v1821, 1e-06
      %vm1838 = vcmp.lt.f32.partialorder %v1822, 1e-06
      %vm1839 = vcmp.lt.f32.partialorder %v1823, 1e-06
      %vm1840 = vcmp.lt.f32.partialorder %v1824, 1e-06
      %v1841 = vsel %vm1825, 1.0, %v1809
      %v1842 = vsel %vm1826, 1.0, %v1810
      %v1843 = vsel %vm1827, 1.0, %v1811
      %v1844 = vsel %vm1828, 1.0, %v1812
      %v1845 = vsel %vm1829, 1.0, %v1813
      %v1846 = vsel %vm1830, 1.0, %v1814
      %v1847 = vsel %vm1831, 1.0, %v1815
      %v1848 = vsel %vm1832, 1.0, %v1816
      %v1849 = vsel %vm1833, 1.0, %v1817
      %v1850 = vsel %vm1834, 1.0, %v1818
      %v1851 = vsel %vm1835, 1.0, %v1819
      %v1852 = vsel %vm1836, 1.0, %v1820
      %v1853 = vsel %vm1837, 1.0, %v1821
      %v1854 = vsel %vm1838, 1.0, %v1822
      %v1855 = vsel %vm1839, 1.0, %v1823
      %v1856 = vsel %vm1840, 1.0, %v1824
      %v1857 = vld [vmem:[#allocation5] sm:$0xff]
      %v1858 = vld [vmem:[#allocation5 + $0x8] sm:$0xff]
      %v1859 = vld [vmem:[#allocation5 + $0x10] sm:$0xff]
      %v1860 = vld [vmem:[#allocation5 + $0x18] sm:$0xff]
      %v1861 = vld [vmem:[#allocation5 + $0x20] sm:$0xff]
      %v1862 = vld [vmem:[#allocation5 + $0x28] sm:$0xff]
      %v1863 = vld [vmem:[#allocation5 + $0x30] sm:$0xff]
      %v1864 = vld [vmem:[#allocation5 + $0x38] sm:$0xff]
      %v1865 = vld [vmem:[#allocation5 + $0x40] sm:$0xff]
      %v1866 = vld [vmem:[#allocation5 + $0x48] sm:$0xff]
      %v1867 = vld [vmem:[#allocation5 + $0x50] sm:$0xff]
      %v1868 = vld [vmem:[#allocation5 + $0x58] sm:$0xff]
      %v1869 = vld [vmem:[#allocation5 + $0x60] sm:$0xff]
      %v1870 = vld [vmem:[#allocation5 + $0x68] sm:$0xff]
      %v1871 = vld [vmem:[#allocation5 + $0x70] sm:$0xff]
      %v1872 = vld [vmem:[#allocation5 + $0x78] sm:$0xff]
      %v1873 = vmul.f32 %v1809, %v1793
      %v1874 = vmul.f32 %v1810, %v1794
      %v1875 = vmul.f32 %v1811, %v1795
      %v1876 = vmul.f32 %v1812, %v1796
      %v1877 = vmul.f32 %v1813, %v1797
      %v1878 = vmul.f32 %v1814, %v1798
      %v1879 = vmul.f32 %v1815, %v1799
      %v1880 = vmul.f32 %v1816, %v1800
      %v1881 = vmul.f32 %v1817, %v1801
      %v1882 = vmul.f32 %v1818, %v1802
      %v1883 = vmul.f32 %v1819, %v1803
      %v1884 = vmul.f32 %v1820, %v1804
      %v1885 = vmul.f32 %v1821, %v1805
      %v1886 = vmul.f32 %v1822, %v1806
      %v1887 = vmul.f32 %v1823, %v1807
      %v1888 = vmul.f32 %v1824, %v1808
      %v1889 = vsub.f32 %v1857, %v1873
      %v1890 = vsub.f32 %v1858, %v1874
      %v1891 = vsub.f32 %v1859, %v1875
      %v1892 = vsub.f32 %v1860, %v1876
      %v1893 = vsub.f32 %v1861, %v1877
      %v1894 = vsub.f32 %v1862, %v1878
      %v1895 = vsub.f32 %v1863, %v1879
      %v1896 = vsub.f32 %v1864, %v1880
      %v1897 = vsub.f32 %v1865, %v1881
      %v1898 = vsub.f32 %v1866, %v1882
      %v1899 = vsub.f32 %v1867, %v1883
      %v1900 = vsub.f32 %v1868, %v1884
      %v1901 = vsub.f32 %v1869, %v1885
      %v1902 = vsub.f32 %v1870, %v1886
      %v1903 = vsub.f32 %v1871, %v1887
      %v1904 = vsub.f32 %v1872, %v1888
      %v1905 = vrcp.pop %v1841
      %v1906 = vrcp.pop %v1842
      %v1907 = vrcp.pop %v1843
      %v1908 = vrcp.pop %v1844
      %v1909 = vrcp.pop %v1845
      %v1910 = vrcp.pop %v1846
      %v1911 = vrcp.pop %v1847
      %v1912 = vrcp.pop %v1848
      %v1913 = vrcp.pop %v1849
      %v1914 = vrcp.pop %v1850
      %v1915 = vrcp.pop %v1851
      %v1916 = vrcp.pop %v1852
      %v1917 = vrcp.pop %v1853
      %v1918 = vrcp.pop %v1854
      %v1919 = vrcp.pop %v1855
      %v1920 = vrcp.pop %v1856
      %v1921 = vmul.f32 %v1889, %v1905
      %v1922 = vmul.f32 %v1890, %v1906
      %v1923 = vmul.f32 %v1891, %v1907
      %v1924 = vmul.f32 %v1892, %v1908
      %v1925 = vmul.f32 %v1893, %v1909
      %v1926 = vmul.f32 %v1894, %v1910
      %v1927 = vmul.f32 %v1895, %v1911
      %v1928 = vmul.f32 %v1896, %v1912
      %v1929 = vmul.f32 %v1897, %v1913
      %v1930 = vmul.f32 %v1898, %v1914
      %v1931 = vmul.f32 %v1899, %v1915
      %v1932 = vmul.f32 %v1900, %v1916
      %v1933 = vmul.f32 %v1901, %v1917
      %v1934 = vmul.f32 %v1902, %v1918
      %v1935 = vmul.f32 %v1903, %v1919
      %v1936 = vmul.f32 %v1904, %v1920
      %v1937 = vmul.f32 %v1921, -1.0
      %v1938 = vmul.f32 %v1922, -1.0
      %v1939 = vmul.f32 %v1923, -1.0
      %v1940 = vmul.f32 %v1924, -1.0
      %v1941 = vmul.f32 %v1925, -1.0
      %v1942 = vmul.f32 %v1926, -1.0
      %v1943 = vmul.f32 %v1927, -1.0
      %v1944 = vmul.f32 %v1928, -1.0
      %v1945 = vmul.f32 %v1929, -1.0
      %v1946 = vmul.f32 %v1930, -1.0
      %v1947 = vmul.f32 %v1931, -1.0
      %v1948 = vmul.f32 %v1932, -1.0
      %v1949 = vmul.f32 %v1933, -1.0
      %v1950 = vmul.f32 %v1934, -1.0
      %v1951 = vmul.f32 %v1935, -1.0
      %v1952 = vmul.f32 %v1936, -1.0
      %vm1953 = vcmask 7168
      %1954 = vst.msk [vmem:[#allocation14] sm:$0xff] %vm1953, %v1937
      %1955 = vst.msk [vmem:[#allocation14 + $0x8] sm:$0xff] %vm1953, %v1938
      %1956 = vst.msk [vmem:[#allocation14 + $0x10] sm:$0xff] %vm1953, %v1939
      %1957 = vst.msk [vmem:[#allocation14 + $0x18] sm:$0xff] %vm1953, %v1940
      %1958 = vst.msk [vmem:[#allocation14 + $0x20] sm:$0xff] %vm1953, %v1941
      %1959 = vst.msk [vmem:[#allocation14 + $0x28] sm:$0xff] %vm1953, %v1942
      %1960 = vst.msk [vmem:[#allocation14 + $0x30] sm:$0xff] %vm1953, %v1943
      %1961 = vst.msk [vmem:[#allocation14 + $0x38] sm:$0xff] %vm1953, %v1944
      %1962 = vst.msk [vmem:[#allocation14 + $0x40] sm:$0xff] %vm1953, %v1945
      %1963 = vst.msk [vmem:[#allocation14 + $0x48] sm:$0xff] %vm1953, %v1946
      %1964 = vst.msk [vmem:[#allocation14 + $0x50] sm:$0xff] %vm1953, %v1947
      %1965 = vst.msk [vmem:[#allocation14 + $0x58] sm:$0xff] %vm1953, %v1948
      %1966 = vst.msk [vmem:[#allocation14 + $0x60] sm:$0xff] %vm1953, %v1949
      %1967 = vst.msk [vmem:[#allocation14 + $0x68] sm:$0xff] %vm1953, %v1950
      %1968 = vst.msk [vmem:[#allocation14 + $0x70] sm:$0xff] %vm1953, %v1951
      %1969 = vst.msk [vmem:[#allocation14 + $0x78] sm:$0xff] %vm1953, %v1952
    $region49: #{tpu_custom_call.1} parent=1 // pred_fallthru
      _
    // Predicated region
    $region50: #{tpu_custom_call.1} parent=1 // pred_check
      _
    $region51: #{tpu_custom_call.1} parent=1 // pred_check_branch
      %1971 = sbr.rel (0) target = $region53
    $region52: #{tpu_custom_call.1} parent=1 // pred_region
      %s1973 = ssub.s32 2048, 2048
      %1974 = vsyncadd [#allocation8], %s1973
      %s1975 = sshll.u32 [#allocation14], 4
      %s1976 = int_to_ptr.vmem [resolvable:$true] %s1975
      %1981 = dma.vmem_to_hbm [thread:$0]  %s1976, 2048, %s4, [#allocation8], 128, 128, 8
    $region53: #{tpu_custom_call.1} parent=1 // pred_fallthru
      _
    // Predicated region
    $region54: #{tpu_custom_call.1} parent=1 // pred_check
      _
    $region55: #{tpu_custom_call.1} parent=1 // pred_check_branch
      %1983 = sbr.rel (0) target = $region57
    $region56: #{tpu_custom_call.1} parent=1 // pred_region
      %1984 = dma.done [#allocation8], 2048
    $region57: #{tpu_custom_call.1} parent=1 // pred_fallthru
      _
    %1985 = vsyncpa [#allocation7], 1
    %1986 = vsyncpa [#allocation10], 1
    %1987 = vsyncpa [#allocation13], 1
    %1988 = vsyncpa [#allocation8], 1

</llo_original>
